<compile_context>
chip_gen: v7x
topology: tpu7x:2x2x1
jax: 0.10.0
libtpu: 0.0.40
codegen_flags: <defaults>
</compile_context>

<pallas_src>
import functools
from math import sqrt

import jax
import jax.numpy as jnp
from jax.experimental import pallas as pl
from jax.experimental.pallas import tpu as pltpu


def _silu(x):
    return x * jax.nn.sigmoid(x)


def _matT(a, b):
    """a @ b.T on the MXU (contract the last axis of both operands)."""
    return jax.lax.dot_general(
        a, b, dimension_numbers=(((1,), (1,)), ((), ())),
        preferred_element_type=jnp.float32)


def mlstm_kernel(head_num, head_dim, p_dim,
                 # per-batch inputs
                 seq_ref, c0_ref, n0_ref, m0_ref,
                 # fused / folded weights
                 w1_ref, b1_ref, w2_ref, b2_ref, w3_ref, b3_ref,
                 wdn_ref, bdn_ref, gn_ref,
                 # constant 0/1 structure matrices (head broadcast / reduce)
                 bh_hd_ref, bp_hdd_ref, bd_hdd_ref,
                 # outputs
                 out_ref, cout_ref, nout_ref, mout_ref):
    eps = 1e-5
    f32 = jnp.float32
    H, D, P = head_num, head_dim, p_dim
    HD = H * D

    seq = seq_ref[...]                                     # (b, I)

    # ---- LayerNorm (affine folded into W1/b1 host-side) ---------------------
    mu = jnp.mean(seq, axis=-1, keepdims=True)
    var = jnp.mean((seq - mu) ** 2, axis=-1, keepdims=True)
    z = (seq - mu) * jax.lax.rsqrt(var + eps)

    # ---- fused up-projection: [x_t | causal_conv(x_t) | r_t] ----------------
    big1 = jnp.dot(z, w1_ref[...], preferred_element_type=f32) + b1_ref[...]
    x_t = big1[:, 0:P]                                     # (b, P)
    x_c = _silu(big1[:, P:2 * P])                          # (b, P)
    r_t = big1[:, 2 * P:]                                  # (b, HD)

    # ---- fused x_c projection: [q | k/sqrt(d) | i | f | skip] ---------------
    big2 = jnp.dot(x_c, w2_ref[...], preferred_element_type=f32) + b2_ref[...]
    q = big2[:, 0:HD]
    k = big2[:, HD:2 * HD]
    i_t = big2[:, 2 * HD:2 * HD + H]
    f_t = big2[:, 2 * HD + H:2 * HD + 2 * H]
    skip = big2[:, 2 * HD + 2 * H:3 * HD + 2 * H]

    # ---- fused x_t projection: [v | o] ---------------------------------------
    big3 = jnp.dot(x_t, w3_ref[...], preferred_element_type=f32) + b3_ref[...]
    v = big3[:, 0:HD]
    o_g = jax.nn.sigmoid(big3[:, HD:2 * HD])

    # ---- stabilized exponential gates ----------------------------------------
    m0 = m0_ref[...]                                       # (b, H)
    m_new = jnp.maximum(f_t + m0, i_t)
    i_g = jnp.exp(i_t - m_new)
    f_g = jnp.exp(f_t - m_new + m0)
    mout_ref[...] = m_new

    # ---- head-batched state update (lane-dense flat layout) ------------------
    bh_hd = bh_hd_ref[...]          # (H, HD)   : out[h, j]  = 1 iff j//D == h
    bp_hdd = bp_hdd_ref[...]        # (HD, HDD) : tile q/k along d (p-index pattern)
    bd_hdd = bd_hdd_ref[...]        # (HD, HDD) : repeat v along p (d-index pattern)

    f_hd = jnp.dot(f_g, bh_hd, preferred_element_type=f32)          # (b, HD)
    i_hd = jnp.dot(i_g, bh_hd, preferred_element_type=f32)          # (b, HD)
    k_rep = jnp.dot(k, bp_hdd, preferred_element_type=f32)          # (b, HDD)
    q_rep = jnp.dot(q, bp_hdd, preferred_element_type=f32)          # (b, HDD)
    iv_rep = jnp.dot(i_hd * v, bd_hdd, preferred_element_type=f32)  # (b, HDD)
    f_hdd = jnp.dot(f_hd, bd_hdd, preferred_element_type=f32)       # (b, HDD)

    c_new = f_hdd * c0_ref[...] + iv_rep * k_rep            # (b, H*D*D)
    n_new = f_hd * n0_ref[...] + i_hd * k                   # (b, H*D)
    cout_ref[...] = c_new                                   # single lane-dense store
    nout_ref[...] = n_new

    # ---- readout: h = o * (C q) / max(n.q, 1) ---------------------------------
    num = _matT(c_new * q_rep, bd_hdd)                      # (b, HD)  sum over p
    den = jnp.maximum(_matT(n_new * q, bh_hd), 1.0)         # (b, H)
    inv_den_hd = jnp.dot(1.0 / den, bh_hd, preferred_element_type=f32)
    h_t = o_g * num * inv_den_hd                            # (b, HD)

    # ---- GroupNorm (one group per head) ---------------------------------------
    inv_d = 1.0 / float(D)
    gmu = _matT(h_t, bh_hd) * inv_d                         # (b, H)
    cent = h_t - jnp.dot(gmu, bh_hd, preferred_element_type=f32)
    gvar = _matT(cent * cent, bh_hd) * inv_d                # (b, H)
    rstd_hd = jnp.dot(jax.lax.rsqrt(gvar + eps), bh_hd, preferred_element_type=f32)
    gn = cent * rstd_hd * gn_ref[0:1, :] + gn_ref[1:2, :]

    # ---- skip, gating, fused down-projection, residual ------------------------
    mix = (gn + skip) * _silu(r_t)                          # (b, HD)
    out = jnp.dot(mix, wdn_ref[...], preferred_element_type=f32) + bdn_ref[...]
    out_ref[...] = out + seq


def _causal_conv_band(cw, ker_size, p_dim):
    """Banded matrix T such that causal_conv1d(x)[:, l] = (x @ T)[:, l] + bias."""
    j = jnp.arange(p_dim)[:, None]
    l = jnp.arange(p_dim)[None, :]
    diff = l - j
    T = jnp.zeros((p_dim, p_dim), jnp.float32)
    for kk in range(ker_size):
        T = T + jnp.where(diff == (ker_size - 1 - kk), cw[kk], 0.0)
    return T


def _pick_batch_tile(b):
    if b <= 512:
        return b
    for t in (512, 256, 128, 64, 32, 16, 8):
        if b % t == 0:
            return t
    return b


def mlstm_forward(params, seq, hid, *, head_num, head_dim, ker_size):
    c0, n0, m0 = hid
    b, inp_dim = seq.shape
    H, D = head_num, head_dim
    HD = H * D
    HDD = HD * D
    p_dim = params['up_l'][0].shape[0]
    f32 = jnp.float32

    # ---------------- weight folding / fusion (host side) ----------------------
    ln_w, ln_b = params['ln_w'], params['ln_b']
    wul, bul = params['up_l'][0].T, params['up_l'][1]         # (I, P), (P,)
    wur, bur = params['up_r'][0].T, params['up_r'][1]         # (I, HD), (HD,)
    cw = params['conv'][0].reshape(-1)                        # (K,)
    cb = params['conv'][1].reshape(())                        # scalar
    T = _causal_conv_band(cw, ker_size, p_dim)                # (P, P)

    w_conv = wul @ T                                          # conv folded into up_l
    b_conv = bul @ T + cb

    w1 = jnp.concatenate([wul, w_conv, wur], axis=1)          # (I, 2P+HD)
    b1 = jnp.concatenate([bul, b_conv, bur])                  # (2P+HD,)
    b1 = (ln_b @ w1 + b1).reshape(1, -1)                      # fold LayerNorm affine
    w1 = ln_w[:, None] * w1

    inv_sqrt_d = 1.0 / sqrt(float(D))
    wq, bq = params['W_q'][0].T, params['W_q'][1]
    wk, bk = params['W_k'][0].T * inv_sqrt_d, params['W_k'][1] * inv_sqrt_d
    wi, bi = params['W_i'][0].T, params['W_i'][1]
    wf, bf = params['W_f'][0].T, params['W_f'][1]
    wskip = params['skip'][:, :, 0].T                         # (P, HD), no bias
    w2 = jnp.concatenate([wq, wk, wi, wf, wskip], axis=1)     # (P, 3HD+2H)
    b2 = jnp.concatenate([bq, bk, bi, bf, jnp.zeros((HD,), f32)]).reshape(1, -1)

    wv, bv = params['W_v'][0].T, params['W_v'][1]
    wo, bo = params['W_o'][0].T, params['W_o'][1]
    w3 = jnp.concatenate([wv, wo], axis=1)                    # (P, 2HD)
    b3 = jnp.concatenate([bv, bo]).reshape(1, -1)

    wdn = params['down'][0].T                                 # (HD, I)
    bdn = params['down'][1].reshape(1, -1)
    gn = jnp.stack([params['gn_w'], params['gn_b']])          # (2, HD)

    # constant 0/1 structure matrices: head broadcast / reduce as tiny matmuls
    hd_i = jnp.arange(HD)
    hdd_i = jnp.arange(HDD)
    bh_hd = (hd_i[None, :] // D == jnp.arange(H)[:, None]).astype(f32)        # (H, HD)
    bd_hdd = (hdd_i[None, :] // D == hd_i[:, None]).astype(f32)               # (HD, HDD)
    bp_hdd = ((hdd_i[None, :] // (D * D) == hd_i[:, None] // D) &
              (hdd_i[None, :] % D == hd_i[:, None] % D)).astype(f32)          # (HD, HDD)

    # ---------------- pallas_call ----------------------------------------------
    c0f = c0.reshape(b, HDD)                                  # lane-dense state
    n0f = n0.reshape(b, HD)

    tb = _pick_batch_tile(b)
    nb = b // tb

    def batched(cols):
        return pl.BlockSpec((tb, cols), lambda i: (i, 0))

    def resident(arr):
        return pl.BlockSpec(arr.shape, lambda i: (0, 0))

    args = (seq, c0f, n0f, m0,
            w1, b1, w2, b2, w3, b3, wdn, bdn, gn,
            bh_hd, bp_hdd, bd_hdd)
    in_specs = [batched(inp_dim), batched(HDD), batched(HD), batched(H)] + \
               [resident(a) for a in args[4:]]
    out_specs = [batched(inp_dim), batched(HDD), batched(HD), batched(H)]
    out_shape = (
        jax.ShapeDtypeStruct((b, inp_dim), f32),
        jax.ShapeDtypeStruct((b, HDD), f32),
        jax.ShapeDtypeStruct((b, HD), f32),
        jax.ShapeDtypeStruct((b, H), f32),
    )

    kernel = functools.partial(mlstm_kernel, head_num, head_dim, p_dim)
    out, c_t, n_t, m_t = pl.pallas_call(
        kernel,
        out_shape=out_shape,
        grid_spec=pltpu.PrefetchScalarGridSpec(
            num_scalar_prefetch=0,
            grid=(nb,),
            in_specs=in_specs,
            out_specs=out_specs),
        compiler_params=pltpu.CompilerParams(
            dimension_semantics=("parallel",)),
    )(*args)

    return out, (c_t.reshape(b, H, D, D), n_t.reshape(b, H, D), m_t)


def mlstm_reference(params, seq, hid, *, head_num, head_dim, ker_size):
    """Pure-JAX mirror of the PyTorch forward, for correctness checking."""
    c0, n0, m0 = hid
    b, _ = seq.shape
    D = head_dim
    eps = 1e-5
    mu = seq.mean(-1, keepdims=True)
    var = ((seq - mu) ** 2).mean(-1, keepdims=True)
    x_n = (seq - mu) / jnp.sqrt(var + eps) * params['ln_w'] + params['ln_b']
    x_t = x_n @ params['up_l'][0].T + params['up_l'][1]
    r_t = x_n @ params['up_r'][0].T + params['up_r'][1]
    cw = params['conv'][0][0, 0]
    cb = params['conv'][1][0]
    xp = jnp.pad(x_t, ((0, 0), (ker_size - 1, 0)))
    conv = cb + sum(cw[k] * xp[:, k:k + x_t.shape[1]] for k in range(ker_size))
    x_c = conv * jax.nn.sigmoid(conv)
    q = (x_c @ params['W_q'][0].T + params['W_q'][1]).reshape(b, head_num, D)
    k = (x_c @ params['W_k'][0].T + params['W_k'][1]).reshape(b, head_num, D) / sqrt(D)
    v = (x_t @ params['W_v'][0].T + params['W_v'][1]).reshape(b, head_num, D)
    i_t = x_c @ params['W_i'][0].T + params['W_i'][1]
    f_t = x_c @ params['W_f'][0].T + params['W_f'][1]
    o_t = jax.nn.sigmoid(x_t @ params['W_o'][0].T + params['W_o'][1])
    m_t = jnp.maximum(f_t + m0, i_t)
    ig = jnp.exp(i_t - m_t)
    fg = jnp.exp(f_t - m_t + m0)
    c_t = fg[:, :, None, None] * c0 + ig[:, :, None, None] * jnp.einsum('bhd,bhp->bhdp', v, k)
    n_t = fg[:, :, None] * n0 + ig[:, :, None] * k
    num = jnp.einsum('bhdp,bhp->bhd', c_t, q)
    den = jnp.maximum(jnp.einsum('bhd,bhd->bh', n_t, q), 1.0)
    h = o_t * (num / den[:, :, None]).reshape(b, head_num * D)
    hg = h.reshape(b, head_num, D)
    gmu = hg.mean(-1, keepdims=True)
    gvar = ((hg - gmu) ** 2).mean(-1, keepdims=True)
    gn = ((hg - gmu) / jnp.sqrt(gvar + eps)).reshape(b, head_num * D) * params['gn_w'] + params['gn_b']
    skip = x_c @ params['skip'][:, :, 0].T
    out = (gn + skip) * (r_t * jax.nn.sigmoid(r_t))
    out = out @ params['down'][0].T + params['down'][1]
    return out + seq, (c_t, n_t, m_t)


def make_params(key, inp_dim, head_num, head_dim, p_factor=2, ker_size=4):
    hid_dim = head_num * head_dim
    p_dim = p_factor * inp_dim
    ks = jax.random.split(key, 16)

    def lin(k, fan_in, fan_out):
        kw, kb = jax.random.split(k)
        lim = 1.0 / sqrt(fan_in)
        w = jax.random.uniform(kw, (fan_out, fan_in), jnp.float32, -lim, lim)
        bvec = jax.random.uniform(kb, (fan_out,), jnp.float32, -lim, lim)
        return w, bvec

    p = {}
    p['ln_w'] = jnp.ones((inp_dim,), jnp.float32)
    p['ln_b'] = jnp.zeros((inp_dim,), jnp.float32)
    p['up_l'] = lin(ks[0], inp_dim, p_dim)
    p['up_r'] = lin(ks[1], inp_dim, hid_dim)
    p['down'] = lin(ks[2], hid_dim, inp_dim)
    lim_c = 1.0 / sqrt(ker_size)
    p['conv'] = (jax.random.uniform(ks[3], (1, 1, ker_size), jnp.float32, -lim_c, lim_c),
                 jax.random.uniform(ks[4], (1,), jnp.float32, -lim_c, lim_c))
    lim_s = 1.0 / sqrt(p_dim)
    p['skip'] = jax.random.uniform(ks[5], (hid_dim, p_dim, 1), jnp.float32, -lim_s, lim_s)
    p['W_i'] = lin(ks[6], p_dim, head_num)
    p['W_f'] = lin(ks[7], p_dim, head_num)
    p['W_o'] = lin(ks[8], p_dim, hid_dim)
    p['W_q'] = lin(ks[9], p_dim, hid_dim)
    p['W_k'] = lin(ks[10], p_dim, hid_dim)
    p['W_v'] = lin(ks[11], p_dim, hid_dim)
    p['gn_w'] = jnp.ones((hid_dim,), jnp.float32)
    p['gn_b'] = jnp.zeros((hid_dim,), jnp.float32)
    return p


if __name__ == "__main__":
    inp_dim, head_num, head_dim, p_factor, ker_size = 32, 4, 8, 2, 4
    batch = 2

    key = jax.random.PRNGKey(0)
    kp, kx = jax.random.split(key)
    params = make_params(kp, inp_dim, head_num, head_dim, p_factor, ker_size)
    seq = jax.random.normal(kx, (batch, inp_dim), jnp.float32)

    # init_hidden()
    c0 = jnp.zeros((batch, head_num, head_dim, head_dim), jnp.float32)
    n0 = jnp.ones((batch, head_num, head_dim), jnp.float32)
    m0 = jnp.zeros((batch, head_num), jnp.float32)

    out, (c_t, n_t, m_t) = mlstm_forward(
        params, seq, (c0, n0, m0),
        head_num=head_num, head_dim=head_dim, ker_size=ker_size)
    jax.block_until_ready((out, c_t, n_t, m_t))

    out_r, (c_r, n_r, m_r) = mlstm_reference(
        params, seq, (c0, n0, m0),
        head_num=head_num, head_dim=head_dim, ker_size=ker_size)

    assert out.shape == (batch, inp_dim)
    assert c_t.shape == (batch, head_num, head_dim, head_dim)
    assert n_t.shape == (batch, head_num, head_dim)
    assert m_t.shape == (batch, head_num)
    for a, r in ((out, out_r), (c_t, c_r), (n_t, n_r), (m_t, m_r)):
        assert float(jnp.max(jnp.abs(a - r))) < 1e-3

    print("KERNEL_OK")
</pallas_src>

<mosaic_0001>
module attributes {stable_mosaic.version = 11 : i64} {
  func.func @mlstm_kernel(%arg0: i32, %arg1: memref<2x32xf32, #tpu.memory_space<vmem>>, %arg2: memref<2x256xf32, #tpu.memory_space<vmem>>, %arg3: memref<2x32xf32, #tpu.memory_space<vmem>>, %arg4: memref<2x4xf32, #tpu.memory_space<vmem>>, %arg5: memref<32x160xf32, #tpu.memory_space<vmem>>, %arg6: memref<1x160xf32, #tpu.memory_space<vmem>>, %arg7: memref<64x104xf32, #tpu.memory_space<vmem>>, %arg8: memref<1x104xf32, #tpu.memory_space<vmem>>, %arg9: memref<64x64xf32, #tpu.memory_space<vmem>>, %arg10: memref<1x64xf32, #tpu.memory_space<vmem>>, %arg11: memref<32x32xf32, #tpu.memory_space<vmem>>, %arg12: memref<1x32xf32, #tpu.memory_space<vmem>>, %arg13: memref<2x32xf32, #tpu.memory_space<vmem>>, %arg14: memref<4x32xf32, #tpu.memory_space<vmem>>, %arg15: memref<32x256xf32, #tpu.memory_space<vmem>>, %arg16: memref<32x256xf32, #tpu.memory_space<vmem>>, %arg17: memref<2x32xf32, #tpu.memory_space<vmem>>, %arg18: memref<2x256xf32, #tpu.memory_space<vmem>>, %arg19: memref<2x32xf32, #tpu.memory_space<vmem>>, %arg20: memref<2x4xf32, #tpu.memory_space<vmem>>) attributes {dimension_semantics = [#tpu.dimension_semantics<parallel>], iteration_bounds = array<i64: 1>, scalar_prefetch = 0 : i64, scratch_operands = 0 : i64, tpu.core_type = #tpu.core_type<tc>, window_params = [{transform_indices = @transform_0, window_bounds = array<i64: 2, 32>}, {transform_indices = @transform_1, window_bounds = array<i64: 2, 256>}, {transform_indices = @transform_2, window_bounds = array<i64: 2, 32>}, {transform_indices = @transform_3, window_bounds = array<i64: 2, 4>}, {pipeline_mode = #tpu.pipeline_mode<synchronous>, transform_indices = @transform_4, window_bounds = array<i64: 32, 160>}, {pipeline_mode = #tpu.pipeline_mode<synchronous>, transform_indices = @transform_5, window_bounds = array<i64: 1, 160>}, {pipeline_mode = #tpu.pipeline_mode<synchronous>, transform_indices = @transform_6, window_bounds = array<i64: 64, 104>}, {pipeline_mode = #tpu.pipeline_mode<synchronous>, transform_indices = @transform_7, window_bounds = array<i64: 1, 104>}, {pipeline_mode = #tpu.pipeline_mode<synchronous>, transform_indices = @transform_8, window_bounds = array<i64: 64, 64>}, {pipeline_mode = #tpu.pipeline_mode<synchronous>, transform_indices = @transform_9, window_bounds = array<i64: 1, 64>}, {pipeline_mode = #tpu.pipeline_mode<synchronous>, transform_indices = @transform_10, window_bounds = array<i64: 32, 32>}, {pipeline_mode = #tpu.pipeline_mode<synchronous>, transform_indices = @transform_11, window_bounds = array<i64: 1, 32>}, {pipeline_mode = #tpu.pipeline_mode<synchronous>, transform_indices = @transform_12, window_bounds = array<i64: 2, 32>}, {pipeline_mode = #tpu.pipeline_mode<synchronous>, transform_indices = @transform_13, window_bounds = array<i64: 4, 32>}, {pipeline_mode = #tpu.pipeline_mode<synchronous>, transform_indices = @transform_14, window_bounds = array<i64: 32, 256>}, {pipeline_mode = #tpu.pipeline_mode<synchronous>, transform_indices = @transform_15, window_bounds = array<i64: 32, 256>}, {transform_indices = @transform_16, window_bounds = array<i64: 2, 32>}, {transform_indices = @transform_17, window_bounds = array<i64: 2, 256>}, {transform_indices = @transform_18, window_bounds = array<i64: 2, 32>}, {transform_indices = @transform_19, window_bounds = array<i64: 2, 4>}]} {
    %c0 = arith.constant 0 : index
    %c0_0 = arith.constant 0 : index
    %0 = vector.load %arg1[%c0, %c0_0] : memref<2x32xf32, #tpu.memory_space<vmem>>, vector<2x32xf32>
    %cst = arith.constant dense<0.000000e+00> : vector<2xf32>
    %1 = vector.multi_reduction <add>, %0, %cst [1] : vector<2x32xf32> to vector<2xf32>
    %2 = vector.shape_cast %1 : vector<2xf32> to vector<2x1xf32>
    %cst_1 = arith.constant 3.200000e+01 : f32
    %3 = vector.broadcast %cst_1 : f32 to vector<2x1xf32>
    %4 = arith.divf %2, %3 : vector<2x1xf32>
    %5 = vector.broadcast %4 : vector<2x1xf32> to vector<2x32xf32>
    %6 = arith.subf %0, %5 : vector<2x32xf32>
    %7 = arith.mulf %6, %6 : vector<2x32xf32>
    %cst_2 = arith.constant dense<0.000000e+00> : vector<2xf32>
    %8 = vector.multi_reduction <add>, %7, %cst_2 [1] : vector<2x32xf32> to vector<2xf32>
    %9 = vector.shape_cast %8 : vector<2xf32> to vector<2x1xf32>
    %cst_3 = arith.constant 3.200000e+01 : f32
    %10 = vector.broadcast %cst_3 : f32 to vector<2x1xf32>
    %11 = arith.divf %9, %10 : vector<2x1xf32>
    %12 = vector.broadcast %4 : vector<2x1xf32> to vector<2x32xf32>
    %13 = arith.subf %0, %12 : vector<2x32xf32>
    %cst_4 = arith.constant 9.99999974E-6 : f32
    %14 = vector.broadcast %cst_4 : f32 to vector<2x1xf32>
    %15 = arith.addf %11, %14 : vector<2x1xf32>
    %16 = math.rsqrt %15 : vector<2x1xf32>
    %17 = vector.broadcast %16 : vector<2x1xf32> to vector<2x32xf32>
    %18 = arith.mulf %13, %17 : vector<2x32xf32>
    %c0_5 = arith.constant 0 : index
    %c0_6 = arith.constant 0 : index
    %19 = vector.load %arg5[%c0_5, %c0_6] : memref<32x160xf32, #tpu.memory_space<vmem>>, vector<32x160xf32>
    %cst_7 = arith.constant dense<0.000000e+00> : vector<2x160xf32>
    %20 = tpu.matmul %18, %19, %cst_7 {dimension_numbers = #tpu.dot_dimension_numbers<[1], [0], [0], [1], [0, 0, 1, 1], [], []>} : vector<2x32xf32>, vector<32x160xf32>, vector<2x160xf32> -> vector<2x160xf32>
    %c0_8 = arith.constant 0 : index
    %c0_9 = arith.constant 0 : index
    %21 = vector.load %arg6[%c0_8, %c0_9] : memref<1x160xf32, #tpu.memory_space<vmem>>, vector<1x160xf32>
    %22 = vector.broadcast %21 : vector<1x160xf32> to vector<2x160xf32>
    %23 = arith.addf %20, %22 : vector<2x160xf32>
    %24 = vector.extract_strided_slice %23 {offsets = [0, 0], sizes = [2, 64], strides = [1, 1]} : vector<2x160xf32> to vector<2x64xf32>
    %25 = vector.extract_strided_slice %23 {offsets = [0, 64], sizes = [2, 64], strides = [1, 1]} : vector<2x160xf32> to vector<2x64xf32>
    %26 = arith.negf %25 : vector<2x64xf32>
    %27 = math.exp %26 : vector<2x64xf32>
    %cst_10 = arith.constant 1.000000e+00 : f32
    %28 = vector.broadcast %cst_10 : f32 to vector<2x64xf32>
    %29 = arith.addf %28, %27 : vector<2x64xf32>
    %30 = arith.divf %28, %29 : vector<2x64xf32>
    %31 = arith.mulf %25, %30 : vector<2x64xf32>
    %32 = vector.extract_strided_slice %23 {offsets = [0, 128], sizes = [2, 32], strides = [1, 1]} : vector<2x160xf32> to vector<2x32xf32>
    %c0_11 = arith.constant 0 : index
    %c0_12 = arith.constant 0 : index
    %33 = vector.load %arg7[%c0_11, %c0_12] : memref<64x104xf32, #tpu.memory_space<vmem>>, vector<64x104xf32>
    %cst_13 = arith.constant dense<0.000000e+00> : vector<2x104xf32>
    %34 = tpu.matmul %31, %33, %cst_13 {dimension_numbers = #tpu.dot_dimension_numbers<[1], [0], [0], [1], [0, 0, 1, 1], [], []>} : vector<2x64xf32>, vector<64x104xf32>, vector<2x104xf32> -> vector<2x104xf32>
    %c0_14 = arith.constant 0 : index
    %c0_15 = arith.constant 0 : index
    %35 = vector.load %arg8[%c0_14, %c0_15] : memref<1x104xf32, #tpu.memory_space<vmem>>, vector<1x104xf32>
    %36 = vector.broadcast %35 : vector<1x104xf32> to vector<2x104xf32>
    %37 = arith.addf %34, %36 : vector<2x104xf32>
    %38 = vector.extract_strided_slice %37 {offsets = [0, 0], sizes = [2, 32], strides = [1, 1]} : vector<2x104xf32> to vector<2x32xf32>
    %39 = vector.extract_strided_slice %37 {offsets = [0, 32], sizes = [2, 32], strides = [1, 1]} : vector<2x104xf32> to vector<2x32xf32>
    %40 = vector.extract_strided_slice %37 {offsets = [0, 64], sizes = [2, 4], strides = [1, 1]} : vector<2x104xf32> to vector<2x4xf32>
    %41 = vector.extract_strided_slice %37 {offsets = [0, 68], sizes = [2, 4], strides = [1, 1]} : vector<2x104xf32> to vector<2x4xf32>
    %42 = vector.extract_strided_slice %37 {offsets = [0, 72], sizes = [2, 32], strides = [1, 1]} : vector<2x104xf32> to vector<2x32xf32>
    %c0_16 = arith.constant 0 : index
    %c0_17 = arith.constant 0 : index
    %43 = vector.load %arg9[%c0_16, %c0_17] : memref<64x64xf32, #tpu.memory_space<vmem>>, vector<64x64xf32>
    %cst_18 = arith.constant dense<0.000000e+00> : vector<2x64xf32>
    %44 = tpu.matmul %24, %43, %cst_18 {dimension_numbers = #tpu.dot_dimension_numbers<[1], [0], [0], [1], [0, 0, 1, 1], [], []>} : vector<2x64xf32>, vector<64x64xf32>, vector<2x64xf32> -> vector<2x64xf32>
    %c0_19 = arith.constant 0 : index
    %c0_20 = arith.constant 0 : index
    %45 = vector.load %arg10[%c0_19, %c0_20] : memref<1x64xf32, #tpu.memory_space<vmem>>, vector<1x64xf32>
    %46 = vector.broadcast %45 : vector<1x64xf32> to vector<2x64xf32>
    %47 = arith.addf %44, %46 : vector<2x64xf32>
    %48 = vector.extract_strided_slice %47 {offsets = [0, 0], sizes = [2, 32], strides = [1, 1]} : vector<2x64xf32> to vector<2x32xf32>
    %49 = vector.extract_strided_slice %47 {offsets = [0, 32], sizes = [2, 32], strides = [1, 1]} : vector<2x64xf32> to vector<2x32xf32>
    %50 = arith.negf %49 : vector<2x32xf32>
    %51 = math.exp %50 : vector<2x32xf32>
    %cst_21 = arith.constant 1.000000e+00 : f32
    %52 = vector.broadcast %cst_21 : f32 to vector<2x32xf32>
    %53 = arith.addf %52, %51 : vector<2x32xf32>
    %54 = arith.divf %52, %53 : vector<2x32xf32>
    %c0_22 = arith.constant 0 : index
    %c0_23 = arith.constant 0 : index
    %55 = vector.load %arg4[%c0_22, %c0_23] : memref<2x4xf32, #tpu.memory_space<vmem>>, vector<2x4xf32>
    %56 = arith.addf %41, %55 : vector<2x4xf32>
    %57 = arith.maximumf %56, %40 : vector<2x4xf32>
    %58 = arith.subf %40, %57 : vector<2x4xf32>
    %59 = math.exp %58 : vector<2x4xf32>
    %60 = arith.subf %41, %57 : vector<2x4xf32>
    %61 = arith.addf %60, %55 : vector<2x4xf32>
    %62 = math.exp %61 : vector<2x4xf32>
    %c0_24 = arith.constant 0 : index
    %c0_25 = arith.constant 0 : index
    %63 = vector.load %arg20[%c0_24, %c0_25] : memref<2x4xf32, #tpu.memory_space<vmem>>, vector<2x4xf32>
    tpu.vector_store %arg20[%c0_24, %c0_25], %57 {strides = array<i32>} : memref<2x4xf32, #tpu.memory_space<vmem>>, vector<2x4xf32>,
    %c0_26 = arith.constant 0 : index
    %c0_27 = arith.constant 0 : index
    %64 = vector.load %arg14[%c0_26, %c0_27] : memref<4x32xf32, #tpu.memory_space<vmem>>, vector<4x32xf32>
    %c0_28 = arith.constant 0 : index
    %c0_29 = arith.constant 0 : index
    %65 = vector.load %arg15[%c0_28, %c0_29] : memref<32x256xf32, #tpu.memory_space<vmem>>, vector<32x256xf32>
    %c0_30 = arith.constant 0 : index
    %c0_31 = arith.constant 0 : index
    %66 = vector.load %arg16[%c0_30, %c0_31] : memref<32x256xf32, #tpu.memory_space<vmem>>, vector<32x256xf32>
    %cst_32 = arith.constant dense<0.000000e+00> : vector<2x32xf32>
    %67 = tpu.matmul %62, %64, %cst_32 {dimension_numbers = #tpu.dot_dimension_numbers<[1], [0], [0], [1], [0, 0, 1, 1], [], []>} : vector<2x4xf32>, vector<4x32xf32>, vector<2x32xf32> -> vector<2x32xf32>
    %cst_33 = arith.constant dense<0.000000e+00> : vector<2x32xf32>
    %68 = tpu.matmul %59, %64, %cst_33 {dimension_numbers = #tpu.dot_dimension_numbers<[1], [0], [0], [1], [0, 0, 1, 1], [], []>} : vector<2x4xf32>, vector<4x32xf32>, vector<2x32xf32> -> vector<2x32xf32>
    %cst_34 = arith.constant dense<0.000000e+00> : vector<2x256xf32>
    %69 = tpu.matmul %39, %65, %cst_34 {dimension_numbers = #tpu.dot_dimension_numbers<[1], [0], [0], [1], [0, 0, 1, 1], [], []>} : vector<2x32xf32>, vector<32x256xf32>, vector<2x256xf32> -> vector<2x256xf32>
    %cst_35 = arith.constant dense<0.000000e+00> : vector<2x256xf32>
    %70 = tpu.matmul %38, %65, %cst_35 {dimension_numbers = #tpu.dot_dimension_numbers<[1], [0], [0], [1], [0, 0, 1, 1], [], []>} : vector<2x32xf32>, vector<32x256xf32>, vector<2x256xf32> -> vector<2x256xf32>
    %71 = arith.mulf %68, %48 : vector<2x32xf32>
    %cst_36 = arith.constant dense<0.000000e+00> : vector<2x256xf32>
    %72 = tpu.matmul %71, %66, %cst_36 {dimension_numbers = #tpu.dot_dimension_numbers<[1], [0], [0], [1], [0, 0, 1, 1], [], []>} : vector<2x32xf32>, vector<32x256xf32>, vector<2x256xf32> -> vector<2x256xf32>
    %cst_37 = arith.constant dense<0.000000e+00> : vector<2x256xf32>
    %73 = tpu.matmul %67, %66, %cst_37 {dimension_numbers = #tpu.dot_dimension_numbers<[1], [0], [0], [1], [0, 0, 1, 1], [], []>} : vector<2x32xf32>, vector<32x256xf32>, vector<2x256xf32> -> vector<2x256xf32>
    %c0_38 = arith.constant 0 : index
    %c0_39 = arith.constant 0 : index
    %74 = vector.load %arg2[%c0_38, %c0_39] : memref<2x256xf32, #tpu.memory_space<vmem>>, vector<2x256xf32>
    %75 = arith.mulf %73, %74 : vector<2x256xf32>
    %76 = arith.mulf %72, %69 : vector<2x256xf32>
    %77 = arith.addf %75, %76 : vector<2x256xf32>
    %c0_40 = arith.constant 0 : index
    %c0_41 = arith.constant 0 : index
    %78 = vector.load %arg3[%c0_40, %c0_41] : memref<2x32xf32, #tpu.memory_space<vmem>>, vector<2x32xf32>
    %79 = arith.mulf %67, %78 : vector<2x32xf32>
    %80 = arith.mulf %68, %39 : vector<2x32xf32>
    %81 = arith.addf %79, %80 : vector<2x32xf32>
    %c0_42 = arith.constant 0 : index
    %c0_43 = arith.constant 0 : index
    %82 = vector.load %arg18[%c0_42, %c0_43] : memref<2x256xf32, #tpu.memory_space<vmem>>, vector<2x256xf32>
    tpu.vector_store %arg18[%c0_42, %c0_43], %77 {strides = array<i32>} : memref<2x256xf32, #tpu.memory_space<vmem>>, vector<2x256xf32>,
    %c0_44 = arith.constant 0 : index
    %c0_45 = arith.constant 0 : index
    %83 = vector.load %arg19[%c0_44, %c0_45] : memref<2x32xf32, #tpu.memory_space<vmem>>, vector<2x32xf32>
    tpu.vector_store %arg19[%c0_44, %c0_45], %81 {strides = array<i32>} : memref<2x32xf32, #tpu.memory_space<vmem>>, vector<2x32xf32>,
    %84 = arith.mulf %77, %70 : vector<2x256xf32>
    %cst_46 = arith.constant dense<0.000000e+00> : vector<2x32xf32>
    %85 = tpu.matmul %84, %66, %cst_46 {dimension_numbers = #tpu.dot_dimension_numbers<[1], [1], [0], [0], [0, 0, 1, 0], [], []>} : vector<2x256xf32>, vector<32x256xf32>, vector<2x32xf32> -> vector<2x32xf32>
    %86 = arith.mulf %81, %38 : vector<2x32xf32>
    %cst_47 = arith.constant dense<0.000000e+00> : vector<2x4xf32>
    %87 = tpu.matmul %86, %64, %cst_47 {dimension_numbers = #tpu.dot_dimension_numbers<[1], [1], [0], [0], [0, 0, 1, 0], [], []>} : vector<2x32xf32>, vector<4x32xf32>, vector<2x4xf32> -> vector<2x4xf32>
    %cst_48 = arith.constant 1.000000e+00 : f32
    %88 = vector.broadcast %cst_48 : f32 to vector<2x4xf32>
    %89 = arith.maximumf %87, %88 : vector<2x4xf32>
    %cst_49 = arith.constant 1.000000e+00 : f32
    %90 = vector.broadcast %cst_49 : f32 to vector<2x4xf32>
    %91 = arith.divf %90, %89 : vector<2x4xf32>
    %cst_50 = arith.constant dense<0.000000e+00> : vector<2x32xf32>
    %92 = tpu.matmul %91, %64, %cst_50 {dimension_numbers = #tpu.dot_dimension_numbers<[1], [0], [0], [1], [0, 0, 1, 1], [], []>} : vector<2x4xf32>, vector<4x32xf32>, vector<2x32xf32> -> vector<2x32xf32>
    %93 = arith.mulf %54, %85 : vector<2x32xf32>
    %94 = arith.mulf %93, %92 : vector<2x32xf32>
    %cst_51 = arith.constant dense<0.000000e+00> : vector<2x4xf32>
    %95 = tpu.matmul %94, %64, %cst_51 {dimension_numbers = #tpu.dot_dimension_numbers<[1], [1], [0], [0], [0, 0, 1, 0], [], []>} : vector<2x32xf32>, vector<4x32xf32>, vector<2x4xf32> -> vector<2x4xf32>
    %cst_52 = arith.constant 1.250000e-01 : f32
    %96 = vector.broadcast %cst_52 : f32 to vector<2x4xf32>
    %97 = arith.mulf %95, %96 : vector<2x4xf32>
    %cst_53 = arith.constant dense<0.000000e+00> : vector<2x32xf32>
    %98 = tpu.matmul %97, %64, %cst_53 {dimension_numbers = #tpu.dot_dimension_numbers<[1], [0], [0], [1], [0, 0, 1, 1], [], []>} : vector<2x4xf32>, vector<4x32xf32>, vector<2x32xf32> -> vector<2x32xf32>
    %99 = arith.subf %94, %98 : vector<2x32xf32>
    %100 = arith.mulf %99, %99 : vector<2x32xf32>
    %cst_54 = arith.constant dense<0.000000e+00> : vector<2x4xf32>
    %101 = tpu.matmul %100, %64, %cst_54 {dimension_numbers = #tpu.dot_dimension_numbers<[1], [1], [0], [0], [0, 0, 1, 0], [], []>} : vector<2x32xf32>, vector<4x32xf32>, vector<2x4xf32> -> vector<2x4xf32>
    %cst_55 = arith.constant 1.250000e-01 : f32
    %102 = vector.broadcast %cst_55 : f32 to vector<2x4xf32>
    %103 = arith.mulf %101, %102 : vector<2x4xf32>
    %cst_56 = arith.constant 9.99999974E-6 : f32
    %104 = vector.broadcast %cst_56 : f32 to vector<2x4xf32>
    %105 = arith.addf %103, %104 : vector<2x4xf32>
    %106 = math.rsqrt %105 : vector<2x4xf32>
    %cst_57 = arith.constant dense<0.000000e+00> : vector<2x32xf32>
    %107 = tpu.matmul %106, %64, %cst_57 {dimension_numbers = #tpu.dot_dimension_numbers<[1], [0], [0], [1], [0, 0, 1, 1], [], []>} : vector<2x4xf32>, vector<4x32xf32>, vector<2x32xf32> -> vector<2x32xf32>
    %108 = arith.mulf %99, %107 : vector<2x32xf32>
    %c0_58 = arith.constant 0 : index
    %c0_59 = arith.constant 0 : index
    %109 = vector.load %arg13[%c0_58, %c0_59] : memref<2x32xf32, #tpu.memory_space<vmem>>, vector<1x32xf32>
    %110 = vector.broadcast %109 : vector<1x32xf32> to vector<2x32xf32>
    %111 = arith.mulf %108, %110 : vector<2x32xf32>
    %c1 = arith.constant 1 : index
    %c0_60 = arith.constant 0 : index
    %112 = vector.load %arg13[%c1, %c0_60] : memref<2x32xf32, #tpu.memory_space<vmem>>, vector<1x32xf32>
    %113 = vector.broadcast %112 : vector<1x32xf32> to vector<2x32xf32>
    %114 = arith.addf %111, %113 : vector<2x32xf32>
    %115 = arith.addf %114, %42 : vector<2x32xf32>
    %116 = arith.negf %32 : vector<2x32xf32>
    %117 = math.exp %116 : vector<2x32xf32>
    %cst_61 = arith.constant 1.000000e+00 : f32
    %118 = vector.broadcast %cst_61 : f32 to vector<2x32xf32>
    %119 = arith.addf %118, %117 : vector<2x32xf32>
    %120 = arith.divf %118, %119 : vector<2x32xf32>
    %121 = arith.mulf %32, %120 : vector<2x32xf32>
    %122 = arith.mulf %115, %121 : vector<2x32xf32>
    %c0_62 = arith.constant 0 : index
    %c0_63 = arith.constant 0 : index
    %123 = vector.load %arg11[%c0_62, %c0_63] : memref<32x32xf32, #tpu.memory_space<vmem>>, vector<32x32xf32>
    %cst_64 = arith.constant dense<0.000000e+00> : vector<2x32xf32>
    %124 = tpu.matmul %122, %123, %cst_64 {dimension_numbers = #tpu.dot_dimension_numbers<[1], [0], [0], [1], [0, 0, 1, 1], [], []>} : vector<2x32xf32>, vector<32x32xf32>, vector<2x32xf32> -> vector<2x32xf32>
    %c0_65 = arith.constant 0 : index
    %c0_66 = arith.constant 0 : index
    %125 = vector.load %arg12[%c0_65, %c0_66] : memref<1x32xf32, #tpu.memory_space<vmem>>, vector<1x32xf32>
    %126 = vector.broadcast %125 : vector<1x32xf32> to vector<2x32xf32>
    %127 = arith.addf %124, %126 : vector<2x32xf32>
    %128 = arith.addf %127, %0 : vector<2x32xf32>
    %c0_67 = arith.constant 0 : index
    %c0_68 = arith.constant 0 : index
    %129 = vector.load %arg17[%c0_67, %c0_68] : memref<2x32xf32, #tpu.memory_space<vmem>>, vector<2x32xf32>
    tpu.vector_store %arg17[%c0_67, %c0_68], %128 {strides = array<i32>} : memref<2x32xf32, #tpu.memory_space<vmem>>, vector<2x32xf32>,
    return
  }
  func.func @transform_0(%arg0: i32) -> (i32, i32) {
    %c0_i32 = arith.constant 0 : i32
    %c0_i32_0 = arith.constant 0 : i32
    return %arg0, %c0_i32 : i32, i32
  }
  func.func @transform_1(%arg0: i32) -> (i32, i32) {
    %c0_i32 = arith.constant 0 : i32
    %c0_i32_0 = arith.constant 0 : i32
    return %arg0, %c0_i32 : i32, i32
  }
  func.func @transform_2(%arg0: i32) -> (i32, i32) {
    %c0_i32 = arith.constant 0 : i32
    %c0_i32_0 = arith.constant 0 : i32
    return %arg0, %c0_i32 : i32, i32
  }
  func.func @transform_3(%arg0: i32) -> (i32, i32) {
    %c0_i32 = arith.constant 0 : i32
    %c0_i32_0 = arith.constant 0 : i32
    return %arg0, %c0_i32 : i32, i32
  }
  func.func @transform_4(%arg0: i32) -> (i32, i32) {
    %c0_i32 = arith.constant 0 : i32
    %c0_i32_0 = arith.constant 0 : i32
    %c0_i32_1 = arith.constant 0 : i32
    return %c0_i32, %c0_i32_0 : i32, i32
  }
  func.func @transform_5(%arg0: i32) -> (i32, i32) {
    %c0_i32 = arith.constant 0 : i32
    %c0_i32_0 = arith.constant 0 : i32
    %c0_i32_1 = arith.constant 0 : i32
    return %c0_i32, %c0_i32_0 : i32, i32
  }
  func.func @transform_6(%arg0: i32) -> (i32, i32) {
    %c0_i32 = arith.constant 0 : i32
    %c0_i32_0 = arith.constant 0 : i32
    %c0_i32_1 = arith.constant 0 : i32
    return %c0_i32, %c0_i32_0 : i32, i32
  }
  func.func @transform_7(%arg0: i32) -> (i32, i32) {
    %c0_i32 = arith.constant 0 : i32
    %c0_i32_0 = arith.constant 0 : i32
    %c0_i32_1 = arith.constant 0 : i32
    return %c0_i32, %c0_i32_0 : i32, i32
  }
  func.func @transform_8(%arg0: i32) -> (i32, i32) {
    %c0_i32 = arith.constant 0 : i32
    %c0_i32_0 = arith.constant 0 : i32
    %c0_i32_1 = arith.constant 0 : i32
    return %c0_i32, %c0_i32_0 : i32, i32
  }
  func.func @transform_9(%arg0: i32) -> (i32, i32) {
    %c0_i32 = arith.constant 0 : i32
    %c0_i32_0 = arith.constant 0 : i32
    %c0_i32_1 = arith.constant 0 : i32
    return %c0_i32, %c0_i32_0 : i32, i32
  }
  func.func @transform_10(%arg0: i32) -> (i32, i32) {
    %c0_i32 = arith.constant 0 : i32
    %c0_i32_0 = arith.constant 0 : i32
    %c0_i32_1 = arith.constant 0 : i32
    return %c0_i32, %c0_i32_0 : i32, i32
  }
  func.func @transform_11(%arg0: i32) -> (i32, i32) {
    %c0_i32 = arith.constant 0 : i32
    %c0_i32_0 = arith.constant 0 : i32
    %c0_i32_1 = arith.constant 0 : i32
    return %c0_i32, %c0_i32_0 : i32, i32
  }
  func.func @transform_12(%arg0: i32) -> (i32, i32) {
    %c0_i32 = arith.constant 0 : i32
    %c0_i32_0 = arith.constant 0 : i32
    %c0_i32_1 = arith.constant 0 : i32
    return %c0_i32, %c0_i32_0 : i32, i32
  }
  func.func @transform_13(%arg0: i32) -> (i32, i32) {
    %c0_i32 = arith.constant 0 : i32
    %c0_i32_0 = arith.constant 0 : i32
    %c0_i32_1 = arith.constant 0 : i32
    return %c0_i32, %c0_i32_0 : i32, i32
  }
  func.func @transform_14(%arg0: i32) -> (i32, i32) {
    %c0_i32 = arith.constant 0 : i32
    %c0_i32_0 = arith.constant 0 : i32
    %c0_i32_1 = arith.constant 0 : i32
    return %c0_i32, %c0_i32_0 : i32, i32
  }
  func.func @transform_15(%arg0: i32) -> (i32, i32) {
    %c0_i32 = arith.constant 0 : i32
    %c0_i32_0 = arith.constant 0 : i32
    %c0_i32_1 = arith.constant 0 : i32
    return %c0_i32, %c0_i32_0 : i32, i32
  }
  func.func @transform_16(%arg0: i32) -> (i32, i32) {
    %c0_i32 = arith.constant 0 : i32
    %c0_i32_0 = arith.constant 0 : i32
    return %arg0, %c0_i32 : i32, i32
  }
  func.func @transform_17(%arg0: i32) -> (i32, i32) {
    %c0_i32 = arith.constant 0 : i32
    %c0_i32_0 = arith.constant 0 : i32
    return %arg0, %c0_i32 : i32, i32
  }
  func.func @transform_18(%arg0: i32) -> (i32, i32) {
    %c0_i32 = arith.constant 0 : i32
    %c0_i32_0 = arith.constant 0 : i32
    return %arg0, %c0_i32 : i32, i32
  }
  func.func @transform_19(%arg0: i32) -> (i32, i32) {
    %c0_i32 = arith.constant 0 : i32
    %c0_i32_0 = arith.constant 0 : i32
    return %arg0, %c0_i32 : i32, i32
  }
}

</mosaic_0001>

<llo_original>
// kernel: tpu_custom_call.1
$region0: #{tpu_custom_call.1}
  #allocation0 [shape = 'u32[]', space=smem, size = 0x4, offset = 0x4, fixed_abs, tag = 'smem constant byte address 0x4 - core index']
  #allocation1 [shape = 'u32[144,128]{1,0:T(1,128)}', space=vmem, size = 0x12000, scoped, tag = 'internal scratch']
  %s0 = inlined_call_operand.hbm [shape: f32[2,32], index: 0, kind: input, shape index: {}]
  %s1 = inlined_call_operand.hbm [shape: f32[2,256], index: 1, kind: input, shape index: {}]
  %s2 = inlined_call_operand.hbm [shape: f32[2,32], index: 2, kind: input, shape index: {}]
  %s3 = inlined_call_operand.hbm [shape: f32[2,4], index: 3, kind: input, shape index: {}]
  %s4 = inlined_call_operand.hbm [shape: f32[32,160], index: 4, kind: input, shape index: {}]
  %s5 = inlined_call_operand.hbm [shape: f32[1,160], index: 5, kind: input, shape index: {}]
  %s6 = inlined_call_operand.hbm [shape: f32[64,104], index: 6, kind: input, shape index: {}]
  %s7 = inlined_call_operand.vmem [shape: f32[1,104], index: 7, kind: input, shape index: {}]
  %s8 = inlined_call_operand.hbm [shape: f32[64,64], index: 8, kind: input, shape index: {}]
  %s9 = inlined_call_operand.hbm [shape: f32[1,64], index: 9, kind: input, shape index: {}]
  %s10 = inlined_call_operand.vmem [shape: f32[32,32], index: 10, kind: input, shape index: {}]
  %s11 = inlined_call_operand.vmem [shape: f32[1,32], index: 11, kind: input, shape index: {}]
  %s12 = inlined_call_operand.vmem [shape: f32[2,32], index: 12, kind: input, shape index: {}]
  %s13 = inlined_call_operand.vmem [shape: f32[4,32], index: 13, kind: input, shape index: {}]
  %s14 = inlined_call_operand.hbm [shape: f32[32,256], index: 14, kind: input, shape index: {}]
  %s15 = inlined_call_operand.hbm [shape: f32[32,256], index: 15, kind: input, shape index: {}]
  %s16 = inlined_call_operand.hbm [shape: f32[2,32], index: 16, kind: output, shape index: {0}]
  %s17 = inlined_call_operand.hbm [shape: f32[2,256], index: 17, kind: output, shape index: {1}]
  %s18 = inlined_call_operand.hbm [shape: f32[2,32], index: 18, kind: output, shape index: {2}]
  %s19 = inlined_call_operand.hbm [shape: f32[2,4], index: 19, kind: output, shape index: {3}]
  %20 = xla_tuple %s16, %s17, %s18, %s19
  %s21 = sld [smem:[#allocation0]]
  $region142: #{tpu_custom_call.1} parent=0
    _
  %s23 = ssub.s32 1, %s21
  %s24 = scalar_select 0, %s23, %s21
  $region1: #{tpu_custom_call.1} parent=0
    #allocation2 [shape = 'u8[1024]{0}', space=vmem, size = 0x400, scoped, tag = 'input window, operand 0, single buffered']
    #allocation3 [shape = 's32[1]{0}', space=sflag, size = 0x4, scoped, tag = 'scoped memory for tpu_custom_call.1']
    #allocation4 [shape = 's32[1]{0}', space=sflag, size = 0x4, scoped, tag = 'scoped memory for tpu_custom_call.1']
    #allocation5 [shape = 'u8[2048]{0}', space=vmem, size = 0x800, scoped, tag = 'input window, operand 1, single buffered']
    #allocation6 [shape = 's32[1]{0}', space=sflag, size = 0x4, scoped, tag = 'scoped memory for tpu_custom_call.1']
    #allocation7 [shape = 'u8[1024]{0}', space=vmem, size = 0x400, scoped, tag = 'input window, operand 2, single buffered']
    #allocation8 [shape = 'u8[1024]{0}', space=vmem, size = 0x400, scoped, tag = 'input window, operand 3, single buffered']
    #allocation9 [shape = 's32[1]{0}', space=sflag, size = 0x4, scoped, tag = 'scoped memory for tpu_custom_call.1']
    #allocation10 [shape = 'u8[32768]{0}', space=vmem, size = 0x8000, scoped, tag = 'input window, operand 4, single buffered']
    #allocation11 [shape = 'u8[1024]{0}', space=vmem, size = 0x400, scoped, tag = 'input window, operand 5, single buffered']
    #allocation12 [shape = 's32[1]{0}', space=sflag, size = 0x4, scoped, tag = 'scoped memory for tpu_custom_call.1']
    #allocation13 [shape = 'u8[32768]{0}', space=vmem, size = 0x8000, scoped, tag = 'input window, operand 6, single buffered']
    #allocation14 [shape = 'u8[32768]{0}', space=vmem, size = 0x8000, scoped, tag = 'input window, operand 8, single buffered']
    #allocation15 [shape = 's32[1]{0}', space=sflag, size = 0x4, scoped, tag = 'scoped memory for tpu_custom_call.1']
    #allocation16 [shape = 'u8[512]{0}', space=vmem, size = 0x400, scoped, tag = 'input window, operand 9, single buffered']
    #allocation17 [shape = 'u8[32768]{0}', space=vmem, size = 0x8000, scoped, tag = 'input window, operand 14, single buffered']
    #allocation18 [shape = 's32[1]{0}', space=sflag, size = 0x4, scoped, tag = 'scoped memory for tpu_custom_call.1']
    #allocation19 [shape = 'u8[32768]{0}', space=vmem, size = 0x8000, scoped, tag = 'input window, operand 15, single buffered']
    #allocation20 [shape = 'u8[1024]{0}', space=vmem, size = 0x400, scoped, tag = 'output window, operand 0, single buffered']
    #allocation21 [shape = 'u8[2048]{0}', space=vmem, size = 0x800, scoped, tag = 'output window, operand 1, single buffered']
    #allocation22 [shape = 's32[1]{0}', space=sflag, size = 0x4, scoped, tag = 'scoped memory for tpu_custom_call.1']
    #allocation23 [shape = 'u8[1024]{0}', space=vmem, size = 0x400, scoped, tag = 'output window, operand 2, single buffered']
    #allocation24 [shape = 'u8[1024]{0}', space=vmem, size = 0x400, scoped, tag = 'output window, operand 3, single buffered']
    #allocation25 [shape = 's32[1]{0}', space=sflag, size = 0x4, scoped, tag = 'scoped memory for tpu_custom_call.1']
    %25 = vsyncpa [#allocation3], 0
    %26 = vsyncpa [#allocation6], 0
    %27 = vsyncpa [#allocation9], 0
    %28 = vsyncpa [#allocation12], 0
    %29 = vsyncpa [#allocation15], 0
    %30 = vsyncpa [#allocation18], 0
    %31 = vsyncpa [#allocation4], 0
    %32 = vsyncpa [#allocation22], 0
    %33 = vsyncpa [#allocation25], 0
    // Predicated region
    $region2: #{tpu_custom_call.1} parent=1 // pred_check
      _
    $region3: #{tpu_custom_call.1} parent=1 // pred_check_branch
      %35 = sbr.rel (0) target = $region5
    $region4: #{tpu_custom_call.1} parent=1 // pred_region
      %s37 = ssub.s32 32, 32
      %38 = vsyncadd [#allocation3], %s37
      %s40 = sshll.u32 [#allocation2], 4
      %s41 = int_to_ptr.vmem [resolvable:$true] %s40
      %43 = dma.hbm_to_vmem [thread:$0]  %s0, 32, %s41, [#allocation3]
    $region5: #{tpu_custom_call.1} parent=1 // pred_fallthru
      _
    // Predicated region
    $region6: #{tpu_custom_call.1} parent=1 // pred_check
      _
    $region7: #{tpu_custom_call.1} parent=1 // pred_check_branch
      %45 = sbr.rel (0) target = $region9
    $region8: #{tpu_custom_call.1} parent=1 // pred_region
      %s47 = ssub.s32 64, 64
      %48 = vsyncadd [#allocation6], %s47
      %s50 = sshll.u32 [#allocation5], 4
      %s51 = int_to_ptr.vmem [resolvable:$true] %s50
      %53 = dma.hbm_to_vmem [thread:$0]  %s1, 64, %s51, [#allocation6]
    $region9: #{tpu_custom_call.1} parent=1 // pred_fallthru
      _
    // Predicated region
    $region10: #{tpu_custom_call.1} parent=1 // pred_check
      _
    $region11: #{tpu_custom_call.1} parent=1 // pred_check_branch
      %55 = sbr.rel (0) target = $region13
    $region12: #{tpu_custom_call.1} parent=1 // pred_region
      %s57 = ssub.s32 32, 32
      %58 = vsyncadd [#allocation6], %s57
      %s60 = sshll.u32 [#allocation7], 4
      %s61 = int_to_ptr.vmem [resolvable:$true] %s60
      %63 = dma.hbm_to_vmem [thread:$0]  %s2, 32, %s61, [#allocation6]
    $region13: #{tpu_custom_call.1} parent=1 // pred_fallthru
      _
    // Predicated region
    $region14: #{tpu_custom_call.1} parent=1 // pred_check
      _
    $region15: #{tpu_custom_call.1} parent=1 // pred_check_branch
      %65 = sbr.rel (0) target = $region17
    $region16: #{tpu_custom_call.1} parent=1 // pred_region
      %s67 = ssub.s32 32, 32
      %68 = vsyncadd [#allocation9], %s67
      %s70 = sshll.u32 [#allocation8], 4
      %s71 = int_to_ptr.vmem [resolvable:$true] %s70
      %73 = dma.hbm_to_vmem [thread:$0]  %s3, 32, %s71, [#allocation9]
    $region17: #{tpu_custom_call.1} parent=1 // pred_fallthru
      _
    // Predicated region
    $region18: #{tpu_custom_call.1} parent=1 // pred_check
      _
    $region19: #{tpu_custom_call.1} parent=1 // pred_check_branch
      %75 = sbr.rel (0) target = $region21
    $region20: #{tpu_custom_call.1} parent=1 // pred_region
      %s77 = ssub.s32 1024, 1024
      %78 = vsyncadd [#allocation9], %s77
      %s79 = sshll.u32 [#allocation10], 4
      %s80 = int_to_ptr.vmem [resolvable:$true] %s79
      %85 = dma.hbm_to_vmem [thread:$0]  %s4, 1024, %s80, [#allocation9], 256, 256, 16
    $region21: #{tpu_custom_call.1} parent=1 // pred_fallthru
      _
    // Predicated region
    $region22: #{tpu_custom_call.1} parent=1 // pred_check
      _
    $region23: #{tpu_custom_call.1} parent=1 // pred_check_branch
      %87 = sbr.rel (0) target = $region25
    $region24: #{tpu_custom_call.1} parent=1 // pred_region
      %s89 = ssub.s32 32, 32
      %90 = vsyncadd [#allocation12], %s89
      %s92 = sshll.u32 [#allocation11], 4
      %s93 = int_to_ptr.vmem [resolvable:$true] %s92
      %95 = dma.hbm_to_vmem [thread:$0]  %s5, 32, %s93, [#allocation12]
    $region25: #{tpu_custom_call.1} parent=1 // pred_fallthru
      _
    // Predicated region
    $region26: #{tpu_custom_call.1} parent=1 // pred_check
      _
    $region27: #{tpu_custom_call.1} parent=1 // pred_check_branch
      %97 = sbr.rel (0) target = $region29
    $region28: #{tpu_custom_call.1} parent=1 // pred_region
      %s99 = ssub.s32 1024, 1024
      %100 = vsyncadd [#allocation12], %s99
      %s101 = sshll.u32 [#allocation13], 4
      %s102 = int_to_ptr.vmem [resolvable:$true] %s101
      %107 = dma.hbm_to_vmem [thread:$0]  %s6, 1024, %s102, [#allocation12], 128, 128, 8
    $region29: #{tpu_custom_call.1} parent=1 // pred_fallthru
      _
    // Predicated region
    $region30: #{tpu_custom_call.1} parent=1 // pred_check
      _
    $region31: #{tpu_custom_call.1} parent=1 // pred_check_branch
      %109 = sbr.rel (0) target = $region33
    $region32: #{tpu_custom_call.1} parent=1 // pred_region
      _
    $region33: #{tpu_custom_call.1} parent=1 // pred_fallthru
      _
    // Predicated region
    $region34: #{tpu_custom_call.1} parent=1 // pred_check
      _
    $region35: #{tpu_custom_call.1} parent=1 // pred_check_branch
      %111 = sbr.rel (0) target = $region37
    $region36: #{tpu_custom_call.1} parent=1 // pred_region
      %s113 = ssub.s32 1024, 1024
      %114 = vsyncadd [#allocation15], %s113
      %s115 = sshll.u32 [#allocation14], 4
      %s116 = int_to_ptr.vmem [resolvable:$true] %s115
      %121 = dma.hbm_to_vmem [thread:$0]  %s8, 1024, %s116, [#allocation15], 128, 128, 8
    $region37: #{tpu_custom_call.1} parent=1 // pred_fallthru
      _
    // Predicated region
    $region38: #{tpu_custom_call.1} parent=1 // pred_check
      _
    $region39: #{tpu_custom_call.1} parent=1 // pred_check_branch
      %123 = sbr.rel (0) target = $region41
    $region40: #{tpu_custom_call.1} parent=1 // pred_region
      %s125 = ssub.s32 16, 16
      %126 = vsyncadd [#allocation15], %s125
      %s128 = sshll.u32 [#allocation16], 4
      %s129 = int_to_ptr.vmem [resolvable:$true] %s128
      %131 = dma.hbm_to_vmem [thread:$0]  %s9, 16, %s129, [#allocation15]
    $region41: #{tpu_custom_call.1} parent=1 // pred_fallthru
      _
    // Predicated region
    $region42: #{tpu_custom_call.1} parent=1 // pred_check
      _
    $region43: #{tpu_custom_call.1} parent=1 // pred_check_branch
      %133 = sbr.rel (0) target = $region45
    $region44: #{tpu_custom_call.1} parent=1 // pred_region
      _
    $region45: #{tpu_custom_call.1} parent=1 // pred_fallthru
      _
    // Predicated region
    $region46: #{tpu_custom_call.1} parent=1 // pred_check
      _
    $region47: #{tpu_custom_call.1} parent=1 // pred_check_branch
      %135 = sbr.rel (0) target = $region49
    $region48: #{tpu_custom_call.1} parent=1 // pred_region
      _
    $region49: #{tpu_custom_call.1} parent=1 // pred_fallthru
      _
    // Predicated region
    $region50: #{tpu_custom_call.1} parent=1 // pred_check
      _
    $region51: #{tpu_custom_call.1} parent=1 // pred_check_branch
      %137 = sbr.rel (0) target = $region53
    $region52: #{tpu_custom_call.1} parent=1 // pred_region
      _
    $region53: #{tpu_custom_call.1} parent=1 // pred_fallthru
      _
    // Predicated region
    $region54: #{tpu_custom_call.1} parent=1 // pred_check
      _
    $region55: #{tpu_custom_call.1} parent=1 // pred_check_branch
      %139 = sbr.rel (0) target = $region57
    $region56: #{tpu_custom_call.1} parent=1 // pred_region
      _
    $region57: #{tpu_custom_call.1} parent=1 // pred_fallthru
      _
    // Predicated region
    $region58: #{tpu_custom_call.1} parent=1 // pred_check
      _
    $region59: #{tpu_custom_call.1} parent=1 // pred_check_branch
      %141 = sbr.rel (0) target = $region61
    $region60: #{tpu_custom_call.1} parent=1 // pred_region
      %s143 = ssub.s32 1024, 1024
      %144 = vsyncadd [#allocation18], %s143
      %s145 = sshll.u32 [#allocation17], 4
      %s146 = int_to_ptr.vmem [resolvable:$true] %s145
      %151 = dma.hbm_to_vmem [thread:$0]  %s14, 1024, %s146, [#allocation18], 256, 256, 16
    $region61: #{tpu_custom_call.1} parent=1 // pred_fallthru
      _
    // Predicated region
    $region62: #{tpu_custom_call.1} parent=1 // pred_check
      _
    $region63: #{tpu_custom_call.1} parent=1 // pred_check_branch
      %153 = sbr.rel (0) target = $region65
    $region64: #{tpu_custom_call.1} parent=1 // pred_region
      %s155 = ssub.s32 1024, 1024
      %156 = vsyncadd [#allocation18], %s155
      %s157 = sshll.u32 [#allocation19], 4
      %s158 = int_to_ptr.vmem [resolvable:$true] %s157
      %163 = dma.hbm_to_vmem [thread:$0]  %s15, 1024, %s158, [#allocation18], 256, 256, 16
    $region65: #{tpu_custom_call.1} parent=1 // pred_fallthru
      _
    // Predicated region
    $region66: #{tpu_custom_call.1} parent=1 // pred_check
      _
    $region67: #{tpu_custom_call.1} parent=1 // pred_check_branch
      %165 = sbr.rel (0) target = $region69
    $region68: #{tpu_custom_call.1} parent=1 // pred_region
      %166 = dma.done [#allocation3], 32
    $region69: #{tpu_custom_call.1} parent=1 // pred_fallthru
      _
    // Predicated region
    $region70: #{tpu_custom_call.1} parent=1 // pred_check
      _
    $region71: #{tpu_custom_call.1} parent=1 // pred_check_branch
      %168 = sbr.rel (0) target = $region73
    $region72: #{tpu_custom_call.1} parent=1 // pred_region
      %169 = dma.done [#allocation6], 64
    $region73: #{tpu_custom_call.1} parent=1 // pred_fallthru
      _
    // Predicated region
    $region74: #{tpu_custom_call.1} parent=1 // pred_check
      _
    $region75: #{tpu_custom_call.1} parent=1 // pred_check_branch
      %171 = sbr.rel (0) target = $region77
    $region76: #{tpu_custom_call.1} parent=1 // pred_region
      %172 = dma.done [#allocation6], 32
    $region77: #{tpu_custom_call.1} parent=1 // pred_fallthru
      _
    // Predicated region
    $region78: #{tpu_custom_call.1} parent=1 // pred_check
      _
    $region79: #{tpu_custom_call.1} parent=1 // pred_check_branch
      %174 = sbr.rel (0) target = $region81
    $region80: #{tpu_custom_call.1} parent=1 // pred_region
      %175 = dma.done [#allocation9], 32
    $region81: #{tpu_custom_call.1} parent=1 // pred_fallthru
      _
    // Predicated region
    $region82: #{tpu_custom_call.1} parent=1 // pred_check
      _
    $region83: #{tpu_custom_call.1} parent=1 // pred_check_branch
      %177 = sbr.rel (0) target = $region85
    $region84: #{tpu_custom_call.1} parent=1 // pred_region
      %178 = dma.done [#allocation9], 1024
    $region85: #{tpu_custom_call.1} parent=1 // pred_fallthru
      _
    // Predicated region
    $region86: #{tpu_custom_call.1} parent=1 // pred_check
      _
    $region87: #{tpu_custom_call.1} parent=1 // pred_check_branch
      %180 = sbr.rel (0) target = $region89
    $region88: #{tpu_custom_call.1} parent=1 // pred_region
      %181 = dma.done [#allocation12], 32
    $region89: #{tpu_custom_call.1} parent=1 // pred_fallthru
      _
    // Predicated region
    $region90: #{tpu_custom_call.1} parent=1 // pred_check
      _
    $region91: #{tpu_custom_call.1} parent=1 // pred_check_branch
      %183 = sbr.rel (0) target = $region93
    $region92: #{tpu_custom_call.1} parent=1 // pred_region
      %184 = dma.done [#allocation12], 1024
    $region93: #{tpu_custom_call.1} parent=1 // pred_fallthru
      _
    // Predicated region
    $region94: #{tpu_custom_call.1} parent=1 // pred_check
      _
    $region95: #{tpu_custom_call.1} parent=1 // pred_check_branch
      %186 = sbr.rel (0) target = $region97
    $region96: #{tpu_custom_call.1} parent=1 // pred_region
      %187 = dma.done [#allocation15], 1024
    $region97: #{tpu_custom_call.1} parent=1 // pred_fallthru
      _
    // Predicated region
    $region98: #{tpu_custom_call.1} parent=1 // pred_check
      _
    $region99: #{tpu_custom_call.1} parent=1 // pred_check_branch
      %189 = sbr.rel (0) target = $region101
    $region100: #{tpu_custom_call.1} parent=1 // pred_region
      %190 = dma.done [#allocation15], 16
    $region101: #{tpu_custom_call.1} parent=1 // pred_fallthru
      _
    // Predicated region
    $region102: #{tpu_custom_call.1} parent=1 // pred_check
      _
    $region103: #{tpu_custom_call.1} parent=1 // pred_check_branch
      %192 = sbr.rel (0) target = $region105
    $region104: #{tpu_custom_call.1} parent=1 // pred_region
      %193 = dma.done [#allocation18], 1024
    $region105: #{tpu_custom_call.1} parent=1 // pred_fallthru
      _
    // Predicated region
    $region106: #{tpu_custom_call.1} parent=1 // pred_check
      _
    $region107: #{tpu_custom_call.1} parent=1 // pred_check_branch
      %195 = sbr.rel (0) target = $region109
    $region108: #{tpu_custom_call.1} parent=1 // pred_region
      %196 = dma.done [#allocation18], 1024
    $region109: #{tpu_custom_call.1} parent=1 // pred_fallthru
      _
    %v197 = vld [vmem:[#allocation2] sm:$0x3]
    %vm198 = vcmask 254976
    %v199 = vsel %vm198, %v197, 0.0
    %200 = vadd.xlane.f32.xlu0 %v199
    %v201 = vpop.xlane.xlu0 %200
    %v202 = vrcp.pop 32.0
    %v203 = vmul.f32 %v201, %v202
    %v204 = vsub.f32 %v197, %v203
    %v205 = vmul.f32 %v204, %v204
    %v206 = vsel %vm198, %v205, 0.0
    %207 = vadd.xlane.f32.xlu0 %v206
    %v208 = vpop.xlane.xlu0 %207
    %v209 = vmul.f32 %v208, %v202
    %v210 = vadd.f32 %v209, 1e-05
    %v211 = vrsqrt.pop %v210
    %v212 = vmul.f32 %v204, %v211
    %v213 = vld [vmem:[#allocation10] sm:$0xff]
    %v214 = vld [vmem:[#allocation10 + $0x8] sm:$0xff]
    %v215 = vld [vmem:[#allocation10 + $0x10] sm:$0xff]
    %v216 = vld [vmem:[#allocation10 + $0x18] sm:$0xff]
    %v217 = vld [vmem:[#allocation10 + $0x20] sm:$0xff]
    %v218 = vld [vmem:[#allocation10 + $0x28] sm:$0xff]
    %v219 = vld [vmem:[#allocation10 + $0x30] sm:$0xff]
    %v220 = vld [vmem:[#allocation10 + $0x38] sm:$0xff]
    %v221 = vld [vmem:[#allocation11] sm:$0x3]
    %v223 = vlaneseq
    %v224 = vshrl.u32 %v223, 7
    %v225 = vsub.s32 0, %v224
    %v226 = vrot.slane %v221, %v225
    %v227 = vlaneseq
    %v228 = vshrl.u32 %v227, 7
    %v229 = vsub.s32 1, %v228
    %v230 = vrot.slane %v221, %v229
    %vm233 = vcmask 261120
    %v235 = vsel %vm233, %v212, 0
    %237 = vmatprep.subr.mxu0 %v214
    %238 = vmatpush1.msra.mxu0 %v213
    %239 = vmatprep.subr.mxu0 %v216
    %240 = vmatpush1.msra.mxu0 %v215
    %241 = vmatprep.subr.mxu0 %v218
    %242 = vmatpush1.msra.mxu0 %v217
    %243 = vmatprep.subr.mxu0 %v220
    %244 = vmatpush1.msra.mxu0 %v219
    %245 = vmatprep.subr.mxu0 0.0
    %246 = vmatpush1.msra.mxu0 0.0
    %247 = vmatprep.subr.mxu0 0.0
    %248 = vmatpush1.msra.mxu0 0.0
    %249 = vmatprep.subr.mxu0 0.0
    %250 = vmatpush1.msra.mxu0 0.0
    %251 = vmatprep.subr.mxu0 0.0
    %252 = vmatpush1.msra.mxu0 0.0
    %253 = vmatprep.subr.mxu0 0.0
    %254 = vmatpush1.msra.mxu0 0.0
    %255 = vmatprep.subr.mxu0 0.0
    %256 = vmatpush1.msra.mxu0 0.0
    %257 = vmatprep.subr.mxu0 0.0
    %258 = vmatpush1.msra.mxu0 0.0
    %259 = vmatprep.subr.mxu0 0.0
    %260 = vmatpush1.msra.mxu0 0.0
    %261 = vmatprep.subr.mxu0 0.0
    %262 = vmatpush1.msra.mxu0 0.0
    %263 = vmatprep.subr.mxu0 0.0
    %264 = vmatpush1.msra.mxu0 0.0
    %265 = vmatprep.subr.mxu0 0.0
    %266 = vmatpush1.msra.mxu0 0.0
    %267 = vmatprep.subr.mxu0 0.0
    %268 = vmatpush1.msra.mxu0 0.0
    %269 = vmatprep.subr.mxu0 0.0
    %270 = vmatpush1.msra.mxu0 0.0
    %271 = vmatprep.subr.mxu0 0.0
    %272 = vmatpush1.msra.mxu0 0.0
    %273 = vmatprep.subr.mxu0 0.0
    %274 = vmatpush1.msra.mxu0 0.0
    %275 = vmatprep.subr.mxu0 0.0
    %276 = vmatpush1.msra.mxu0 0.0
    %277 = vmatprep.subr.mxu0 0.0
    %278 = vmatpush1.msra.mxu0 0.0
    %279 = vmatprep.subr.mxu0 0.0
    %280 = vmatpush1.msra.mxu0 0.0
    %281 = vmatprep.subr.mxu0 0.0
    %282 = vmatpush1.msra.mxu0 0.0
    %283 = vmatprep.subr.mxu0 0.0
    %284 = vmatpush1.msra.mxu0 0.0
    %285 = vmatprep.subr.mxu0 0.0
    %286 = vmatpush1.msra.mxu0 0.0
    %287 = vmatprep.subr.mxu0 0.0
    %288 = vmatpush1.msra.mxu0 0.0
    %289 = vmatprep.subr.mxu0 0.0
    %290 = vmatpush1.msra.mxu0 0.0
    %291 = vmatprep.subr.mxu0 0.0
    %292 = vmatpush1.msra.mxu0 0.0
    %293 = vmatprep.subr.mxu0 0.0
    %294 = vmatpush1.msra.mxu0 0.0
    %295 = vmatprep.subr.mxu0 0.0
    %296 = vmatpush1.msra.mxu0 0.0
    %297 = vmatprep.subr.mxu0 0.0
    %298 = vmatpush1.msra.mxu0 0.0
    %299 = vmatprep.subr.mxu0 0.0
    %300 = vmatpush1.msra.mxu0 0.0
    %301 = vmatprep.mubr.f32.mxu0 0.0
    %302 = vmatmul.mubr.f32.gmra.mrb[0].mxu0 %v235
    %v303 = vpop.f32.mrb[0].mxu0
    %v304 = vadd.f32 %v226, %v303
    %v305 = vpop.f32.mrb[0].mxu0
    %v306 = vadd.f32 %v230, %v305
    %307 = vdwg.mxu0
    %v308 = vxor.u32 %v304, 2147483648
    %v309 = vmul.f32 %v308, 1.442695
    %v310 = vpow.pop %v309
    %v311 = vadd.f32 %v310, 1.0
    %v312 = vrcp.pop %v311
    %v313 = vmul.f32 1.0, %v312
    %v314 = vmul.f32 %v304, %v313
    %v315 = vld [vmem:[#allocation13] sm:$0xff]
    %v316 = vld [vmem:[#allocation13 + $0x8] sm:$0xff]
    %v317 = vld [vmem:[#allocation13 + $0x10] sm:$0xff]
    %v318 = vld [vmem:[#allocation13 + $0x18] sm:$0xff]
    %v319 = vld [vmem:[#allocation13 + $0x20] sm:$0xff]
    %v320 = vld [vmem:[#allocation13 + $0x28] sm:$0xff]
    %v321 = vld [vmem:[#allocation13 + $0x30] sm:$0xff]
    %v322 = vld [vmem:[#allocation13 + $0x38] sm:$0xff]
    %v323 = vld [vmem:[%s7] sm:$0x1]
    %v325 = vlaneseq
    %v326 = vshrl.u32 %v325, 7
    %v327 = vsub.s32 0, %v326
    %v328 = vrot.slane %v323, %v327
    %331 = vrot.lane.b32.xlu0 %v314, 64
    %v332 = vpop.permute.xlu0 %331
    %vm333 = vcmask 523264
    %v334 = vsel %vm333, %v332, 0
    %336 = vmatprep.subr.mxu0 0.0
    %337 = vmatpush1.msra.mxu0 %v315
    %338 = vmatprep.subr.mxu0 0.0
    %339 = vmatpush1.msra.mxu0 %v316
    %340 = vmatprep.subr.mxu0 0.0
    %341 = vmatpush1.msra.mxu0 %v317
    %342 = vmatprep.subr.mxu0 0.0
    %343 = vmatpush1.msra.mxu0 %v318
    %344 = vmatprep.subr.mxu0 0.0
    %345 = vmatpush1.msra.mxu0 %v319
    %346 = vmatprep.subr.mxu0 0.0
    %347 = vmatpush1.msra.mxu0 %v320
    %348 = vmatprep.subr.mxu0 0.0
    %349 = vmatpush1.msra.mxu0 %v321
    %350 = vmatprep.subr.mxu0 0.0
    %351 = vmatpush1.msra.mxu0 %v322
    %352 = vmatprep.subr.mxu0 0.0
    %353 = vmatpush1.msra.mxu0 0.0
    %354 = vmatprep.subr.mxu0 0.0
    %355 = vmatpush1.msra.mxu0 0.0
    %356 = vmatprep.subr.mxu0 0.0
    %357 = vmatpush1.msra.mxu0 0.0
    %358 = vmatprep.subr.mxu0 0.0
    %359 = vmatpush1.msra.mxu0 0.0
    %360 = vmatprep.subr.mxu0 0.0
    %361 = vmatpush1.msra.mxu0 0.0
    %362 = vmatprep.subr.mxu0 0.0
    %363 = vmatpush1.msra.mxu0 0.0
    %364 = vmatprep.subr.mxu0 0.0
    %365 = vmatpush1.msra.mxu0 0.0
    %366 = vmatprep.subr.mxu0 0.0
    %367 = vmatpush1.msra.mxu0 0.0
    %368 = vmatprep.subr.mxu0 0.0
    %369 = vmatpush1.msra.mxu0 0.0
    %370 = vmatprep.subr.mxu0 0.0
    %371 = vmatpush1.msra.mxu0 0.0
    %372 = vmatprep.subr.mxu0 0.0
    %373 = vmatpush1.msra.mxu0 0.0
    %374 = vmatprep.subr.mxu0 0.0
    %375 = vmatpush1.msra.mxu0 0.0
    %376 = vmatprep.subr.mxu0 0.0
    %377 = vmatpush1.msra.mxu0 0.0
    %378 = vmatprep.subr.mxu0 0.0
    %379 = vmatpush1.msra.mxu0 0.0
    %380 = vmatprep.subr.mxu0 0.0
    %381 = vmatpush1.msra.mxu0 0.0
    %382 = vmatprep.subr.mxu0 0.0
    %383 = vmatpush1.msra.mxu0 0.0
    %384 = vmatprep.subr.mxu0 0.0
    %385 = vmatpush1.msra.mxu0 0.0
    %386 = vmatprep.subr.mxu0 0.0
    %387 = vmatpush1.msra.mxu0 0.0
    %388 = vmatprep.subr.mxu0 0.0
    %389 = vmatpush1.msra.mxu0 0.0
    %390 = vmatprep.subr.mxu0 0.0
    %391 = vmatpush1.msra.mxu0 0.0
    %392 = vmatprep.subr.mxu0 0.0
    %393 = vmatpush1.msra.mxu0 0.0
    %394 = vmatprep.subr.mxu0 0.0
    %395 = vmatpush1.msra.mxu0 0.0
    %396 = vmatprep.subr.mxu0 0.0
    %397 = vmatpush1.msra.mxu0 0.0
    %398 = vmatprep.subr.mxu0 0.0
    %399 = vmatpush1.msra.mxu0 0.0
    %400 = vmatprep.mubr.f32.mxu0 0.0
    %401 = vmatmul.mubr.f32.gmra.mrb[0].mxu0 %v334
    %v402 = vpop.f32.mrb[0].mxu0
    %v403 = vadd.f32 %v328, %v402
    %v404 = vpop.f32.mrb[0].mxu0
    %405 = vdwg.mxu0
    %v406 = vld [vmem:[#allocation14] sm:$0xff]
    %v407 = vld [vmem:[#allocation14 + $0x8] sm:$0xff]
    %v408 = vld [vmem:[#allocation14 + $0x10] sm:$0xff]
    %v409 = vld [vmem:[#allocation14 + $0x18] sm:$0xff]
    %v410 = vld [vmem:[#allocation14 + $0x20] sm:$0xff]
    %v411 = vld [vmem:[#allocation14 + $0x28] sm:$0xff]
    %v412 = vld [vmem:[#allocation14 + $0x30] sm:$0xff]
    %v413 = vld [vmem:[#allocation14 + $0x38] sm:$0xff]
    %v414 = vld [vmem:[#allocation16] sm:$0x1]
    %v416 = vlaneseq
    %v417 = vshrl.u32 %v416, 7
    %v418 = vsub.s32 0, %v417
    %v419 = vrot.slane %v414, %v418
    %v422 = vsel %vm333, %v304, 0
    %424 = vmatprep.subr.mxu0 0.0
    %425 = vmatpush1.msra.mxu0 %v406
    %426 = vmatprep.subr.mxu0 0.0
    %427 = vmatpush1.msra.mxu0 %v407
    %428 = vmatprep.subr.mxu0 0.0
    %429 = vmatpush1.msra.mxu0 %v408
    %430 = vmatprep.subr.mxu0 0.0
    %431 = vmatpush1.msra.mxu0 %v409
    %432 = vmatprep.subr.mxu0 0.0
    %433 = vmatpush1.msra.mxu0 %v410
    %434 = vmatprep.subr.mxu0 0.0
    %435 = vmatpush1.msra.mxu0 %v411
    %436 = vmatprep.subr.mxu0 0.0
    %437 = vmatpush1.msra.mxu0 %v412
    %438 = vmatprep.subr.mxu0 0.0
    %439 = vmatpush1.msra.mxu0 %v413
    %440 = vmatprep.subr.mxu0 0.0
    %441 = vmatpush1.msra.mxu0 0.0
    %442 = vmatprep.subr.mxu0 0.0
    %443 = vmatpush1.msra.mxu0 0.0
    %444 = vmatprep.subr.mxu0 0.0
    %445 = vmatpush1.msra.mxu0 0.0
    %446 = vmatprep.subr.mxu0 0.0
    %447 = vmatpush1.msra.mxu0 0.0
    %448 = vmatprep.subr.mxu0 0.0
    %449 = vmatpush1.msra.mxu0 0.0
    %450 = vmatprep.subr.mxu0 0.0
    %451 = vmatpush1.msra.mxu0 0.0
    %452 = vmatprep.subr.mxu0 0.0
    %453 = vmatpush1.msra.mxu0 0.0
    %454 = vmatprep.subr.mxu0 0.0
    %455 = vmatpush1.msra.mxu0 0.0
    %456 = vmatprep.subr.mxu0 0.0
    %457 = vmatpush1.msra.mxu0 0.0
    %458 = vmatprep.subr.mxu0 0.0
    %459 = vmatpush1.msra.mxu0 0.0
    %460 = vmatprep.subr.mxu0 0.0
    %461 = vmatpush1.msra.mxu0 0.0
    %462 = vmatprep.subr.mxu0 0.0
    %463 = vmatpush1.msra.mxu0 0.0
    %464 = vmatprep.subr.mxu0 0.0
    %465 = vmatpush1.msra.mxu0 0.0
    %466 = vmatprep.subr.mxu0 0.0
    %467 = vmatpush1.msra.mxu0 0.0
    %468 = vmatprep.subr.mxu0 0.0
    %469 = vmatpush1.msra.mxu0 0.0
    %470 = vmatprep.subr.mxu0 0.0
    %471 = vmatpush1.msra.mxu0 0.0
    %472 = vmatprep.subr.mxu0 0.0
    %473 = vmatpush1.msra.mxu0 0.0
    %474 = vmatprep.subr.mxu0 0.0
    %475 = vmatpush1.msra.mxu0 0.0
    %476 = vmatprep.subr.mxu0 0.0
    %477 = vmatpush1.msra.mxu0 0.0
    %478 = vmatprep.subr.mxu0 0.0
    %479 = vmatpush1.msra.mxu0 0.0
    %480 = vmatprep.subr.mxu0 0.0
    %481 = vmatpush1.msra.mxu0 0.0
    %482 = vmatprep.subr.mxu0 0.0
    %483 = vmatpush1.msra.mxu0 0.0
    %484 = vmatprep.subr.mxu0 0.0
    %485 = vmatpush1.msra.mxu0 0.0
    %486 = vmatprep.subr.mxu0 0.0
    %487 = vmatpush1.msra.mxu0 0.0
    %488 = vmatprep.mubr.f32.mxu0 0.0
    %489 = vmatmul.mubr.f32.gmra.mrb[0].mxu0 %v422
    %v490 = vpop.f32.mrb[0].mxu0
    %v491 = vadd.f32 %v419, %v490
    %v492 = vpop.f32.mrb[0].mxu0
    %493 = vdwg.mxu0
    %v494 = vxor.u32 %v491, 2147483648
    %v495 = vmul.f32 %v494, 1.442695
    %v496 = vpow.pop %v495
    %v497 = vadd.f32 %v496, 1.0
    %v498 = vrcp.pop %v497
    %v499 = vmul.f32 1.0, %v498
    %v500 = vld [vmem:[#allocation8] sm:$0x3]
    %502 = vrot.lane.b32.xlu0 %v500, 68
    %v503 = vpop.permute.xlu0 %502
    %v505 = vadd.f32 %v403, %v503
    %507 = vrot.lane.b32.xlu0 %v403, 4
    %v508 = vpop.permute.xlu0 %507
    %v510 = vmax.f32 %v505, %v508
    %512 = vrot.lane.b32.xlu0 %v510, 124
    %v513 = vpop.permute.xlu0 %512
    %v515 = vsub.f32 %v403, %v513
    %v516 = vmul.f32 %v515, 1.442695
    %v517 = vpow.pop %v516
    %v518 = vsub.f32 %v403, %v510
    %v519 = vadd.f32 %v518, %v503
    %v520 = vmul.f32 %v519, 1.442695
    %v521 = vpow.pop %v520
    %522 = vrot.lane.b32.xlu0 %v510, 60
    %v523 = vpop.permute.xlu0 %522
    %vm525 = vcmask 25600
    %526 = vst.msk [vmem:[#allocation24] sm:$0x3] %vm525, %v523
    %v527 = vld [vmem:[%s13] sm:$0xf]
    %v528 = vld [vmem:[#allocation17] sm:$0xff]
    %v529 = vld [vmem:[#allocation17 + $0x8] sm:$0xff]
    %v530 = vld [vmem:[#allocation17 + $0x10] sm:$0xff]
    %v531 = vld [vmem:[#allocation17 + $0x18] sm:$0xff]
    %v532 = vld [vmem:[#allocation17 + $0x20] sm:$0xff]
    %v533 = vld [vmem:[#allocation17 + $0x28] sm:$0xff]
    %v534 = vld [vmem:[#allocation17 + $0x30] sm:$0xff]
    %v535 = vld [vmem:[#allocation17 + $0x38] sm:$0xff]
    %v536 = vld [vmem:[#allocation19] sm:$0xff]
    %v537 = vld [vmem:[#allocation19 + $0x8] sm:$0xff]
    %v538 = vld [vmem:[#allocation19 + $0x10] sm:$0xff]
    %v539 = vld [vmem:[#allocation19 + $0x18] sm:$0xff]
    %v540 = vld [vmem:[#allocation19 + $0x20] sm:$0xff]
    %v541 = vld [vmem:[#allocation19 + $0x28] sm:$0xff]
    %v542 = vld [vmem:[#allocation19 + $0x30] sm:$0xff]
    %v543 = vld [vmem:[#allocation19 + $0x38] sm:$0xff]
    %545 = vrot.lane.b32.xlu0 %v521, 60
    %v546 = vpop.permute.xlu0 %545
    %vm547 = vcmask 31744
    %v548 = vsel %vm547, %v546, 0
    %vm550 = vcmask 1043456
    %v552 = vsel %vm550, %v527, 0
    %554 = vmatprep.subr.mxu0 0.0
    %555 = vmatpush1.msra.mxu0 %v552
    %556 = vmatprep.subr.mxu0 0.0
    %557 = vmatpush1.msra.mxu0 0.0
    %558 = vmatprep.subr.mxu0 0.0
    %559 = vmatpush1.msra.mxu0 0.0
    %560 = vmatprep.subr.mxu0 0.0
    %561 = vmatpush1.msra.mxu0 0.0
    %562 = vmatprep.subr.mxu0 0.0
    %563 = vmatpush1.msra.mxu0 0.0
    %564 = vmatprep.subr.mxu0 0.0
    %565 = vmatpush1.msra.mxu0 0.0
    %566 = vmatprep.subr.mxu0 0.0
    %567 = vmatpush1.msra.mxu0 0.0
    %568 = vmatprep.subr.mxu0 0.0
    %569 = vmatpush1.msra.mxu0 0.0
    %570 = vmatprep.subr.mxu0 0.0
    %571 = vmatpush1.msra.mxu0 0.0
    %572 = vmatprep.subr.mxu0 0.0
    %573 = vmatpush1.msra.mxu0 0.0
    %574 = vmatprep.subr.mxu0 0.0
    %575 = vmatpush1.msra.mxu0 0.0
    %576 = vmatprep.subr.mxu0 0.0
    %577 = vmatpush1.msra.mxu0 0.0
    %578 = vmatprep.subr.mxu0 0.0
    %579 = vmatpush1.msra.mxu0 0.0
    %580 = vmatprep.subr.mxu0 0.0
    %581 = vmatpush1.msra.mxu0 0.0
    %582 = vmatprep.subr.mxu0 0.0
    %583 = vmatpush1.msra.mxu0 0.0
    %584 = vmatprep.subr.mxu0 0.0
    %585 = vmatpush1.msra.mxu0 0.0
    %586 = vmatprep.subr.mxu0 0.0
    %587 = vmatpush1.msra.mxu0 0.0
    %588 = vmatprep.subr.mxu0 0.0
    %589 = vmatpush1.msra.mxu0 0.0
    %590 = vmatprep.subr.mxu0 0.0
    %591 = vmatpush1.msra.mxu0 0.0
    %592 = vmatprep.subr.mxu0 0.0
    %593 = vmatpush1.msra.mxu0 0.0
    %594 = vmatprep.subr.mxu0 0.0
    %595 = vmatpush1.msra.mxu0 0.0
    %596 = vmatprep.subr.mxu0 0.0
    %597 = vmatpush1.msra.mxu0 0.0
    %598 = vmatprep.subr.mxu0 0.0
    %599 = vmatpush1.msra.mxu0 0.0
    %600 = vmatprep.subr.mxu0 0.0
    %601 = vmatpush1.msra.mxu0 0.0
    %602 = vmatprep.subr.mxu0 0.0
    %603 = vmatpush1.msra.mxu0 0.0
    %604 = vmatprep.subr.mxu0 0.0
    %605 = vmatpush1.msra.mxu0 0.0
    %606 = vmatprep.subr.mxu0 0.0
    %607 = vmatpush1.msra.mxu0 0.0
    %608 = vmatprep.subr.mxu0 0.0
    %609 = vmatpush1.msra.mxu0 0.0
    %610 = vmatprep.subr.mxu0 0.0
    %611 = vmatpush1.msra.mxu0 0.0
    %612 = vmatprep.subr.mxu0 0.0
    %613 = vmatpush1.msra.mxu0 0.0
    %614 = vmatprep.subr.mxu0 0.0
    %615 = vmatpush1.msra.mxu0 0.0
    %616 = vmatprep.subr.mxu0 0.0
    %617 = vmatpush1.msra.mxu0 0.0
    %618 = vmatprep.mubr.f32.mxu0 0.0
    %619 = vmatmul.mubr.f32.gmra.mrb[0].mxu0 %v548
    %v620 = vpop.f32.mrb[0].mxu0
    %v621 = vadd.f32 0.0, %v620
    %v622 = vpop.f32.mrb[0].mxu0
    %623 = vdwg.mxu0
    %625 = vrot.lane.b32.xlu0 %v517, 64
    %v626 = vpop.permute.xlu0 %625
    %v627 = vsel %vm547, %v626, 0
    %629 = vmatprep.subr.mxu0 0.0
    %630 = vmatpush1.msra.mxu0 %v552
    %631 = vmatprep.subr.mxu0 0.0
    %632 = vmatpush1.msra.mxu0 0.0
    %633 = vmatprep.subr.mxu0 0.0
    %634 = vmatpush1.msra.mxu0 0.0
    %635 = vmatprep.subr.mxu0 0.0
    %636 = vmatpush1.msra.mxu0 0.0
    %637 = vmatprep.subr.mxu0 0.0
    %638 = vmatpush1.msra.mxu0 0.0
    %639 = vmatprep.subr.mxu0 0.0
    %640 = vmatpush1.msra.mxu0 0.0
    %641 = vmatprep.subr.mxu0 0.0
    %642 = vmatpush1.msra.mxu0 0.0
    %643 = vmatprep.subr.mxu0 0.0
    %644 = vmatpush1.msra.mxu0 0.0
    %645 = vmatprep.subr.mxu0 0.0
    %646 = vmatpush1.msra.mxu0 0.0
    %647 = vmatprep.subr.mxu0 0.0
    %648 = vmatpush1.msra.mxu0 0.0
    %649 = vmatprep.subr.mxu0 0.0
    %650 = vmatpush1.msra.mxu0 0.0
    %651 = vmatprep.subr.mxu0 0.0
    %652 = vmatpush1.msra.mxu0 0.0
    %653 = vmatprep.subr.mxu0 0.0
    %654 = vmatpush1.msra.mxu0 0.0
    %655 = vmatprep.subr.mxu0 0.0
    %656 = vmatpush1.msra.mxu0 0.0
    %657 = vmatprep.subr.mxu0 0.0
    %658 = vmatpush1.msra.mxu0 0.0
    %659 = vmatprep.subr.mxu0 0.0
    %660 = vmatpush1.msra.mxu0 0.0
    %661 = vmatprep.subr.mxu0 0.0
    %662 = vmatpush1.msra.mxu0 0.0
    %663 = vmatprep.subr.mxu0 0.0
    %664 = vmatpush1.msra.mxu0 0.0
    %665 = vmatprep.subr.mxu0 0.0
    %666 = vmatpush1.msra.mxu0 0.0
    %667 = vmatprep.subr.mxu0 0.0
    %668 = vmatpush1.msra.mxu0 0.0
    %669 = vmatprep.subr.mxu0 0.0
    %670 = vmatpush1.msra.mxu0 0.0
    %671 = vmatprep.subr.mxu0 0.0
    %672 = vmatpush1.msra.mxu0 0.0
    %673 = vmatprep.subr.mxu0 0.0
    %674 = vmatpush1.msra.mxu0 0.0
    %675 = vmatprep.subr.mxu0 0.0
    %676 = vmatpush1.msra.mxu0 0.0
    %677 = vmatprep.subr.mxu0 0.0
    %678 = vmatpush1.msra.mxu0 0.0
    %679 = vmatprep.subr.mxu0 0.0
    %680 = vmatpush1.msra.mxu0 0.0
    %681 = vmatprep.subr.mxu0 0.0
    %682 = vmatpush1.msra.mxu0 0.0
    %683 = vmatprep.subr.mxu0 0.0
    %684 = vmatpush1.msra.mxu0 0.0
    %685 = vmatprep.subr.mxu0 0.0
    %686 = vmatpush1.msra.mxu0 0.0
    %687 = vmatprep.subr.mxu0 0.0
    %688 = vmatpush1.msra.mxu0 0.0
    %689 = vmatprep.subr.mxu0 0.0
    %690 = vmatpush1.msra.mxu0 0.0
    %691 = vmatprep.subr.mxu0 0.0
    %692 = vmatpush1.msra.mxu0 0.0
    %693 = vmatprep.mubr.f32.mxu0 0.0
    %694 = vmatmul.mubr.f32.gmra.mrb[0].mxu0 %v627
    %v695 = vpop.f32.mrb[0].mxu0
    %v696 = vadd.f32 0.0, %v695
    %v697 = vpop.f32.mrb[0].mxu0
    %698 = vdwg.mxu0
    %699 = vrot.lane.b32.xlu0 %v403, 96
    %v700 = vpop.permute.xlu0 %699
    %v701 = vsel %vm233, %v700, 0
    %703 = vmatprep.subr.mxu0 %v529
    %704 = vmatpush1.msra.mxu0 %v528
    %705 = vmatprep.subr.mxu0 %v531
    %706 = vmatpush1.msra.mxu0 %v530
    %707 = vmatprep.subr.mxu0 %v533
    %708 = vmatpush1.msra.mxu0 %v532
    %709 = vmatprep.subr.mxu0 %v535
    %710 = vmatpush1.msra.mxu0 %v534
    %711 = vmatprep.subr.mxu0 0.0
    %712 = vmatpush1.msra.mxu0 0.0
    %713 = vmatprep.subr.mxu0 0.0
    %714 = vmatpush1.msra.mxu0 0.0
    %715 = vmatprep.subr.mxu0 0.0
    %716 = vmatpush1.msra.mxu0 0.0
    %717 = vmatprep.subr.mxu0 0.0
    %718 = vmatpush1.msra.mxu0 0.0
    %719 = vmatprep.subr.mxu0 0.0
    %720 = vmatpush1.msra.mxu0 0.0
    %721 = vmatprep.subr.mxu0 0.0
    %722 = vmatpush1.msra.mxu0 0.0
    %723 = vmatprep.subr.mxu0 0.0
    %724 = vmatpush1.msra.mxu0 0.0
    %725 = vmatprep.subr.mxu0 0.0
    %726 = vmatpush1.msra.mxu0 0.0
    %727 = vmatprep.subr.mxu0 0.0
    %728 = vmatpush1.msra.mxu0 0.0
    %729 = vmatprep.subr.mxu0 0.0
    %730 = vmatpush1.msra.mxu0 0.0
    %731 = vmatprep.subr.mxu0 0.0
    %732 = vmatpush1.msra.mxu0 0.0
    %733 = vmatprep.subr.mxu0 0.0
    %734 = vmatpush1.msra.mxu0 0.0
    %735 = vmatprep.subr.mxu0 0.0
    %736 = vmatpush1.msra.mxu0 0.0
    %737 = vmatprep.subr.mxu0 0.0
    %738 = vmatpush1.msra.mxu0 0.0
    %739 = vmatprep.subr.mxu0 0.0
    %740 = vmatpush1.msra.mxu0 0.0
    %741 = vmatprep.subr.mxu0 0.0
    %742 = vmatpush1.msra.mxu0 0.0
    %743 = vmatprep.subr.mxu0 0.0
    %744 = vmatpush1.msra.mxu0 0.0
    %745 = vmatprep.subr.mxu0 0.0
    %746 = vmatpush1.msra.mxu0 0.0
    %747 = vmatprep.subr.mxu0 0.0
    %748 = vmatpush1.msra.mxu0 0.0
    %749 = vmatprep.subr.mxu0 0.0
    %750 = vmatpush1.msra.mxu0 0.0
    %751 = vmatprep.subr.mxu0 0.0
    %752 = vmatpush1.msra.mxu0 0.0
    %753 = vmatprep.subr.mxu0 0.0
    %754 = vmatpush1.msra.mxu0 0.0
    %755 = vmatprep.subr.mxu0 0.0
    %756 = vmatpush1.msra.mxu0 0.0
    %757 = vmatprep.subr.mxu0 0.0
    %758 = vmatpush1.msra.mxu0 0.0
    %759 = vmatprep.subr.mxu0 0.0
    %760 = vmatpush1.msra.mxu0 0.0
    %761 = vmatprep.subr.mxu0 0.0
    %762 = vmatpush1.msra.mxu0 0.0
    %763 = vmatprep.subr.mxu0 0.0
    %764 = vmatpush1.msra.mxu0 0.0
    %765 = vmatprep.subr.mxu0 0.0
    %766 = vmatpush1.msra.mxu0 0.0
    %767 = vmatprep.mubr.f32.mxu0 0.0
    %768 = vmatmul.mubr.f32.gmra.mrb[0].mxu0 %v701
    %v769 = vpop.f32.mrb[0].mxu0
    %v770 = vadd.f32 0.0, %v769
    %v771 = vpop.f32.mrb[0].mxu0
    %v772 = vadd.f32 0.0, %v771
    %773 = vdwg.mxu0
    %v774 = vsel %vm233, %v403, 0
    %776 = vmatprep.subr.mxu0 %v529
    %777 = vmatpush1.msra.mxu0 %v528
    %778 = vmatprep.subr.mxu0 %v531
    %779 = vmatpush1.msra.mxu0 %v530
    %780 = vmatprep.subr.mxu0 %v533
    %781 = vmatpush1.msra.mxu0 %v532
    %782 = vmatprep.subr.mxu0 %v535
    %783 = vmatpush1.msra.mxu0 %v534
    %784 = vmatprep.subr.mxu0 0.0
    %785 = vmatpush1.msra.mxu0 0.0
    %786 = vmatprep.subr.mxu0 0.0
    %787 = vmatpush1.msra.mxu0 0.0
    %788 = vmatprep.subr.mxu0 0.0
    %789 = vmatpush1.msra.mxu0 0.0
    %790 = vmatprep.subr.mxu0 0.0
    %791 = vmatpush1.msra.mxu0 0.0
    %792 = vmatprep.subr.mxu0 0.0
    %793 = vmatpush1.msra.mxu0 0.0
    %794 = vmatprep.subr.mxu0 0.0
    %795 = vmatpush1.msra.mxu0 0.0
    %796 = vmatprep.subr.mxu0 0.0
    %797 = vmatpush1.msra.mxu0 0.0
    %798 = vmatprep.subr.mxu0 0.0
    %799 = vmatpush1.msra.mxu0 0.0
    %800 = vmatprep.subr.mxu0 0.0
    %801 = vmatpush1.msra.mxu0 0.0
    %802 = vmatprep.subr.mxu0 0.0
    %803 = vmatpush1.msra.mxu0 0.0
    %804 = vmatprep.subr.mxu0 0.0
    %805 = vmatpush1.msra.mxu0 0.0
    %806 = vmatprep.subr.mxu0 0.0
    %807 = vmatpush1.msra.mxu0 0.0
    %808 = vmatprep.subr.mxu0 0.0
    %809 = vmatpush1.msra.mxu0 0.0
    %810 = vmatprep.subr.mxu0 0.0
    %811 = vmatpush1.msra.mxu0 0.0
    %812 = vmatprep.subr.mxu0 0.0
    %813 = vmatpush1.msra.mxu0 0.0
    %814 = vmatprep.subr.mxu0 0.0
    %815 = vmatpush1.msra.mxu0 0.0
    %816 = vmatprep.subr.mxu0 0.0
    %817 = vmatpush1.msra.mxu0 0.0
    %818 = vmatprep.subr.mxu0 0.0
    %819 = vmatpush1.msra.mxu0 0.0
    %820 = vmatprep.subr.mxu0 0.0
    %821 = vmatpush1.msra.mxu0 0.0
    %822 = vmatprep.subr.mxu0 0.0
    %823 = vmatpush1.msra.mxu0 0.0
    %824 = vmatprep.subr.mxu0 0.0
    %825 = vmatpush1.msra.mxu0 0.0
    %826 = vmatprep.subr.mxu0 0.0
    %827 = vmatpush1.msra.mxu0 0.0
    %828 = vmatprep.subr.mxu0 0.0
    %829 = vmatpush1.msra.mxu0 0.0
    %830 = vmatprep.subr.mxu0 0.0
    %831 = vmatpush1.msra.mxu0 0.0
    %832 = vmatprep.subr.mxu0 0.0
    %833 = vmatpush1.msra.mxu0 0.0
    %834 = vmatprep.subr.mxu0 0.0
    %835 = vmatpush1.msra.mxu0 0.0
    %836 = vmatprep.subr.mxu0 0.0
    %837 = vmatpush1.msra.mxu0 0.0
    %838 = vmatprep.subr.mxu0 0.0
    %839 = vmatpush1.msra.mxu0 0.0
    %840 = vmatprep.mubr.f32.mxu0 0.0
    %841 = vmatmul.mubr.f32.gmra.mrb[0].mxu0 %v774
    %v842 = vpop.f32.mrb[0].mxu0
    %v843 = vadd.f32 0.0, %v842
    %v844 = vpop.f32.mrb[0].mxu0
    %v845 = vadd.f32 0.0, %v844
    %846 = vdwg.mxu0
    %v847 = vmul.f32 %v696, %v491
    %v849 = vsel %vm233, %v847, 0
    %851 = vmatprep.subr.mxu0 %v537
    %852 = vmatpush1.msra.mxu0 %v536
    %853 = vmatprep.subr.mxu0 %v539
    %854 = vmatpush1.msra.mxu0 %v538
    %855 = vmatprep.subr.mxu0 %v541
    %856 = vmatpush1.msra.mxu0 %v540
    %857 = vmatprep.subr.mxu0 %v543
    %858 = vmatpush1.msra.mxu0 %v542
    %859 = vmatprep.subr.mxu0 0.0
    %860 = vmatpush1.msra.mxu0 0.0
    %861 = vmatprep.subr.mxu0 0.0
    %862 = vmatpush1.msra.mxu0 0.0
    %863 = vmatprep.subr.mxu0 0.0
    %864 = vmatpush1.msra.mxu0 0.0
    %865 = vmatprep.subr.mxu0 0.0
    %866 = vmatpush1.msra.mxu0 0.0
    %867 = vmatprep.subr.mxu0 0.0
    %868 = vmatpush1.msra.mxu0 0.0
    %869 = vmatprep.subr.mxu0 0.0
    %870 = vmatpush1.msra.mxu0 0.0
    %871 = vmatprep.subr.mxu0 0.0
    %872 = vmatpush1.msra.mxu0 0.0
    %873 = vmatprep.subr.mxu0 0.0
    %874 = vmatpush1.msra.mxu0 0.0
    %875 = vmatprep.subr.mxu0 0.0
    %876 = vmatpush1.msra.mxu0 0.0
    %877 = vmatprep.subr.mxu0 0.0
    %878 = vmatpush1.msra.mxu0 0.0
    %879 = vmatprep.subr.mxu0 0.0
    %880 = vmatpush1.msra.mxu0 0.0
    %881 = vmatprep.subr.mxu0 0.0
    %882 = vmatpush1.msra.mxu0 0.0
    %883 = vmatprep.subr.mxu0 0.0
    %884 = vmatpush1.msra.mxu0 0.0
    %885 = vmatprep.subr.mxu0 0.0
    %886 = vmatpush1.msra.mxu0 0.0
    %887 = vmatprep.subr.mxu0 0.0
    %888 = vmatpush1.msra.mxu0 0.0
    %889 = vmatprep.subr.mxu0 0.0
    %890 = vmatpush1.msra.mxu0 0.0
    %891 = vmatprep.subr.mxu0 0.0
    %892 = vmatpush1.msra.mxu0 0.0
    %893 = vmatprep.subr.mxu0 0.0
    %894 = vmatpush1.msra.mxu0 0.0
    %895 = vmatprep.subr.mxu0 0.0
    %896 = vmatpush1.msra.mxu0 0.0
    %897 = vmatprep.subr.mxu0 0.0
    %898 = vmatpush1.msra.mxu0 0.0
    %899 = vmatprep.subr.mxu0 0.0
    %900 = vmatpush1.msra.mxu0 0.0
    %901 = vmatprep.subr.mxu0 0.0
    %902 = vmatpush1.msra.mxu0 0.0
    %903 = vmatprep.subr.mxu0 0.0
    %904 = vmatpush1.msra.mxu0 0.0
    %905 = vmatprep.subr.mxu0 0.0
    %906 = vmatpush1.msra.mxu0 0.0
    %907 = vmatprep.subr.mxu0 0.0
    %908 = vmatpush1.msra.mxu0 0.0
    %909 = vmatprep.subr.mxu0 0.0
    %910 = vmatpush1.msra.mxu0 0.0
    %911 = vmatprep.subr.mxu0 0.0
    %912 = vmatpush1.msra.mxu0 0.0
    %913 = vmatprep.subr.mxu0 0.0
    %914 = vmatpush1.msra.mxu0 0.0
    %915 = vmatprep.mubr.f32.mxu0 0.0
    %916 = vmatmul.mubr.f32.gmra.mrb[0].mxu0 %v849
    %v917 = vpop.f32.mrb[0].mxu0
    %v918 = vadd.f32 0.0, %v917
    %v919 = vpop.f32.mrb[0].mxu0
    %v920 = vadd.f32 0.0, %v919
    %921 = vdwg.mxu0
    %v923 = vsel %vm233, %v621, 0
    %925 = vmatprep.subr.mxu0 %v537
    %926 = vmatpush1.msra.mxu0 %v536
    %927 = vmatprep.subr.mxu0 %v539
    %928 = vmatpush1.msra.mxu0 %v538
    %929 = vmatprep.subr.mxu0 %v541
    %930 = vmatpush1.msra.mxu0 %v540
    %931 = vmatprep.subr.mxu0 %v543
    %932 = vmatpush1.msra.mxu0 %v542
    %933 = vmatprep.subr.mxu0 0.0
    %934 = vmatpush1.msra.mxu0 0.0
    %935 = vmatprep.subr.mxu0 0.0
    %936 = vmatpush1.msra.mxu0 0.0
    %937 = vmatprep.subr.mxu0 0.0
    %938 = vmatpush1.msra.mxu0 0.0
    %939 = vmatprep.subr.mxu0 0.0
    %940 = vmatpush1.msra.mxu0 0.0
    %941 = vmatprep.subr.mxu0 0.0
    %942 = vmatpush1.msra.mxu0 0.0
    %943 = vmatprep.subr.mxu0 0.0
    %944 = vmatpush1.msra.mxu0 0.0
    %945 = vmatprep.subr.mxu0 0.0
    %946 = vmatpush1.msra.mxu0 0.0
    %947 = vmatprep.subr.mxu0 0.0
    %948 = vmatpush1.msra.mxu0 0.0
    %949 = vmatprep.subr.mxu0 0.0
    %950 = vmatpush1.msra.mxu0 0.0
    %951 = vmatprep.subr.mxu0 0.0
    %952 = vmatpush1.msra.mxu0 0.0
    %953 = vmatprep.subr.mxu0 0.0
    %954 = vmatpush1.msra.mxu0 0.0
    %955 = vmatprep.subr.mxu0 0.0
    %956 = vmatpush1.msra.mxu0 0.0
    %957 = vmatprep.subr.mxu0 0.0
    %958 = vmatpush1.msra.mxu0 0.0
    %959 = vmatprep.subr.mxu0 0.0
    %960 = vmatpush1.msra.mxu0 0.0
    %961 = vmatprep.subr.mxu0 0.0
    %962 = vmatpush1.msra.mxu0 0.0
    %963 = vmatprep.subr.mxu0 0.0
    %964 = vmatpush1.msra.mxu0 0.0
    %965 = vmatprep.subr.mxu0 0.0
    %966 = vmatpush1.msra.mxu0 0.0
    %967 = vmatprep.subr.mxu0 0.0
    %968 = vmatpush1.msra.mxu0 0.0
    %969 = vmatprep.subr.mxu0 0.0
    %970 = vmatpush1.msra.mxu0 0.0
    %971 = vmatprep.subr.mxu0 0.0
    %972 = vmatpush1.msra.mxu0 0.0
    %973 = vmatprep.subr.mxu0 0.0
    %974 = vmatpush1.msra.mxu0 0.0
    %975 = vmatprep.subr.mxu0 0.0
    %976 = vmatpush1.msra.mxu0 0.0
    %977 = vmatprep.subr.mxu0 0.0
    %978 = vmatpush1.msra.mxu0 0.0
    %979 = vmatprep.subr.mxu0 0.0
    %980 = vmatpush1.msra.mxu0 0.0
    %981 = vmatprep.subr.mxu0 0.0
    %982 = vmatpush1.msra.mxu0 0.0
    %983 = vmatprep.subr.mxu0 0.0
    %984 = vmatpush1.msra.mxu0 0.0
    %985 = vmatprep.subr.mxu0 0.0
    %986 = vmatpush1.msra.mxu0 0.0
    %987 = vmatprep.subr.mxu0 0.0
    %988 = vmatpush1.msra.mxu0 0.0
    %989 = vmatprep.mubr.f32.mxu0 0.0
    %990 = vmatmul.mubr.f32.gmra.mrb[0].mxu0 %v923
    %v991 = vpop.f32.mrb[0].mxu0
    %v992 = vadd.f32 0.0, %v991
    %v993 = vpop.f32.mrb[0].mxu0
    %v994 = vadd.f32 0.0, %v993
    %995 = vdwg.mxu0
    %v996 = vld [vmem:[#allocation5] sm:$0xf]
    %v999 = vunpack.c.l.s4 1983009808
    %v1000 = vunpack.c.0.s8 %v999
    %v1001 = vlaneseq
    %v1002 = vshrl.u32 %v1001, 7
    %v1003 = vsub.s32 %v1000, %v1002
    %v1004 = vrot.slane %v996, %v1003
    %v1005 = vcombine.high %v1004, %v1004
    %v1008 = vmul.f32 %v992, %v1004
    %v1009 = vmul.f32 %v994, %v1005
    %v1010 = vmul.f32 %v918, %v770
    %v1011 = vmul.f32 %v920, %v772
    %v1012 = vadd.f32 %v1008, %v1010
    %v1013 = vadd.f32 %v1009, %v1011
    %v1014 = vld [vmem:[#allocation7] sm:$0x3]
    %v1015 = vmul.f32 %v621, %v1014
    %v1017 = vmul.f32 %v696, %v700
    %v1018 = vadd.f32 %v1015, %v1017
    %v1021 = vcombine.low %v1012, %v1013
    %v1023 = vunpack.c.l.s4 1983009808
    %v1024 = vunpack.c.0.s8 %v1023
    %v1025 = vlaneseq
    %v1026 = vshrl.u32 %v1025, 7
    %v1027 = vsub.s32 %v1024, %v1026
    %v1028 = vrot.slane %v1021, %v1027
    %1030 = vst [vmem:[#allocation21] sm:$0xf] %v1028
    %1031 = vst.msk [vmem:[#allocation23] sm:$0x3] %vm198, %v1018
    %v1032 = vmul.f32 %v1012, %v843
    %v1033 = vmul.f32 %v1013, %v845
    %1034 = vmatprep.subr.mxu0 %v537
    %1035 = vmatpush1.xpose.msra.mxu0 %v536
    %1036 = vmatprep.subr.mxu0 %v539
    %1037 = vmatpush1.xpose.msra.mxu0 %v538
    %1038 = vmatprep.subr.mxu0 %v541
    %1039 = vmatpush1.xpose.msra.mxu0 %v540
    %1040 = vmatprep.subr.mxu0 %v543
    %1041 = vmatpush1.xpose.msra.mxu0 %v542
    %1042 = vmatprep.subr.mxu0 0.0
    %1043 = vmatpush1.xpose.msra.mxu0 0.0
    %1044 = vmatprep.subr.mxu0 0.0
    %1045 = vmatpush1.xpose.msra.mxu0 0.0
    %1046 = vmatprep.subr.mxu0 0.0
    %1047 = vmatpush1.xpose.msra.mxu0 0.0
    %1048 = vmatprep.subr.mxu0 0.0
    %1049 = vmatpush1.xpose.msra.mxu0 0.0
    %1050 = vmatprep.subr.mxu0 0.0
    %1051 = vmatpush1.xpose.msra.mxu0 0.0
    %1052 = vmatprep.subr.mxu0 0.0
    %1053 = vmatpush1.xpose.msra.mxu0 0.0
    %1054 = vmatprep.subr.mxu0 0.0
    %1055 = vmatpush1.xpose.msra.mxu0 0.0
    %1056 = vmatprep.subr.mxu0 0.0
    %1057 = vmatpush1.xpose.msra.mxu0 0.0
    %1058 = vmatprep.subr.mxu0 0.0
    %1059 = vmatpush1.xpose.msra.mxu0 0.0
    %1060 = vmatprep.subr.mxu0 0.0
    %1061 = vmatpush1.xpose.msra.mxu0 0.0
    %1062 = vmatprep.subr.mxu0 0.0
    %1063 = vmatpush1.xpose.msra.mxu0 0.0
    %1064 = vmatprep.subr.mxu0 0.0
    %1065 = vmatpush1.xpose.msra.mxu0 0.0
    %1066 = vmatprep.subr.mxu0 0.0
    %1067 = vmatpush1.xpose.msra.mxu0 0.0
    %1068 = vmatprep.subr.mxu0 0.0
    %1069 = vmatpush1.xpose.msra.mxu0 0.0
    %1070 = vmatprep.subr.mxu0 0.0
    %1071 = vmatpush1.xpose.msra.mxu0 0.0
    %1072 = vmatprep.subr.mxu0 0.0
    %1073 = vmatpush1.xpose.msra.mxu0 0.0
    %1074 = vmatprep.subr.mxu0 0.0
    %1075 = vmatpush1.xpose.msra.mxu0 0.0
    %1076 = vmatprep.subr.mxu0 0.0
    %1077 = vmatpush1.xpose.msra.mxu0 0.0
    %1078 = vmatprep.subr.mxu0 0.0
    %1079 = vmatpush1.xpose.msra.mxu0 0.0
    %1080 = vmatprep.subr.mxu0 0.0
    %1081 = vmatpush1.xpose.msra.mxu0 0.0
    %1082 = vmatprep.subr.mxu0 0.0
    %1083 = vmatpush1.xpose.msra.mxu0 0.0
    %1084 = vmatprep.subr.mxu0 0.0
    %1085 = vmatpush1.xpose.msra.mxu0 0.0
    %1086 = vmatprep.subr.mxu0 0.0
    %1087 = vmatpush1.xpose.msra.mxu0 0.0
    %1088 = vmatprep.subr.mxu0 0.0
    %1089 = vmatpush1.xpose.msra.mxu0 0.0
    %1090 = vmatprep.subr.mxu0 0.0
    %1091 = vmatpush1.xpose.msra.mxu0 0.0
    %1092 = vmatprep.subr.mxu0 0.0
    %1093 = vmatpush1.xpose.msra.mxu0 0.0
    %1094 = vmatprep.subr.mxu0 0.0
    %1095 = vmatpush1.xpose.msra.mxu0 0.0
    %1096 = vmatprep.subr.mxu0 0.0
    %1097 = vmatpush1.xpose.msra.mxu0 0.0
    %1098 = vmatprep.mubr.f32.mxu0 %v1033
    %1099 = vmatmul.mubr.f32.gmra.mrb[0].mxu0 %v1032
    %v1100 = vpop.f32.mrb[0].mxu0
    %v1101 = vadd.f32 0.0, %v1100
    %v1102 = vpop.f32.mrb[0].mxu0
    %1103 = vdwg.mxu0
    %v1104 = vmul.f32 %v1018, %v403
    %v1106 = vsel %vm233, %v1104, 0
    %v1108 = vsel %vm233, %v527, 0
    %1110 = vmatprep.subr.mxu0 0.0
    %1111 = vmatpush1.xpose.msra.mxu0 %v1108
    %1112 = vmatprep.subr.mxu0 0.0
    %1113 = vmatpush1.xpose.msra.mxu0 0.0
    %1114 = vmatprep.subr.mxu0 0.0
    %1115 = vmatpush1.xpose.msra.mxu0 0.0
    %1116 = vmatprep.subr.mxu0 0.0
    %1117 = vmatpush1.xpose.msra.mxu0 0.0
    %1118 = vmatprep.subr.mxu0 0.0
    %1119 = vmatpush1.xpose.msra.mxu0 0.0
    %1120 = vmatprep.subr.mxu0 0.0
    %1121 = vmatpush1.xpose.msra.mxu0 0.0
    %1122 = vmatprep.subr.mxu0 0.0
    %1123 = vmatpush1.xpose.msra.mxu0 0.0
    %1124 = vmatprep.subr.mxu0 0.0
    %1125 = vmatpush1.xpose.msra.mxu0 0.0
    %1126 = vmatprep.subr.mxu0 0.0
    %1127 = vmatpush1.xpose.msra.mxu0 0.0
    %1128 = vmatprep.subr.mxu0 0.0
    %1129 = vmatpush1.xpose.msra.mxu0 0.0
    %1130 = vmatprep.subr.mxu0 0.0
    %1131 = vmatpush1.xpose.msra.mxu0 0.0
    %1132 = vmatprep.subr.mxu0 0.0
    %1133 = vmatpush1.xpose.msra.mxu0 0.0
    %1134 = vmatprep.subr.mxu0 0.0
    %1135 = vmatpush1.xpose.msra.mxu0 0.0
    %1136 = vmatprep.subr.mxu0 0.0
    %1137 = vmatpush1.xpose.msra.mxu0 0.0
    %1138 = vmatprep.subr.mxu0 0.0
    %1139 = vmatpush1.xpose.msra.mxu0 0.0
    %1140 = vmatprep.subr.mxu0 0.0
    %1141 = vmatpush1.xpose.msra.mxu0 0.0
    %1142 = vmatprep.subr.mxu0 0.0
    %1143 = vmatpush1.xpose.msra.mxu0 0.0
    %1144 = vmatprep.subr.mxu0 0.0
    %1145 = vmatpush1.xpose.msra.mxu0 0.0
    %1146 = vmatprep.subr.mxu0 0.0
    %1147 = vmatpush1.xpose.msra.mxu0 0.0
    %1148 = vmatprep.subr.mxu0 0.0
    %1149 = vmatpush1.xpose.msra.mxu0 0.0
    %1150 = vmatprep.subr.mxu0 0.0
    %1151 = vmatpush1.xpose.msra.mxu0 0.0
    %1152 = vmatprep.subr.mxu0 0.0
    %1153 = vmatpush1.xpose.msra.mxu0 0.0
    %1154 = vmatprep.subr.mxu0 0.0
    %1155 = vmatpush1.xpose.msra.mxu0 0.0
    %1156 = vmatprep.subr.mxu0 0.0
    %1157 = vmatpush1.xpose.msra.mxu0 0.0
    %1158 = vmatprep.subr.mxu0 0.0
    %1159 = vmatpush1.xpose.msra.mxu0 0.0
    %1160 = vmatprep.subr.mxu0 0.0
    %1161 = vmatpush1.xpose.msra.mxu0 0.0
    %1162 = vmatprep.subr.mxu0 0.0
    %1163 = vmatpush1.xpose.msra.mxu0 0.0
    %1164 = vmatprep.subr.mxu0 0.0
    %1165 = vmatpush1.xpose.msra.mxu0 0.0
    %1166 = vmatprep.subr.mxu0 0.0
    %1167 = vmatpush1.xpose.msra.mxu0 0.0
    %1168 = vmatprep.subr.mxu0 0.0
    %1169 = vmatpush1.xpose.msra.mxu0 0.0
    %1170 = vmatprep.subr.mxu0 0.0
    %1171 = vmatpush1.xpose.msra.mxu0 0.0
    %1172 = vmatprep.subr.mxu0 0.0
    %1173 = vmatpush1.xpose.msra.mxu0 0.0
    %1174 = vmatprep.mubr.f32.mxu0 0.0
    %1175 = vmatmul.mubr.f32.gmra.mrb[0].mxu0 %v1106
    %v1176 = vpop.f32.mrb[0].mxu0
    %v1177 = vadd.f32 0.0, %v1176
    %v1178 = vpop.f32.mrb[0].mxu0
    %1179 = vdwg.mxu0
    %v1180 = vmax.f32 %v1177, 1.0
    %v1181 = vrcp.pop %v1180
    %v1182 = vmul.f32 1.0, %v1181
    %v1184 = vsel %vm547, %v1182, 0
    %1186 = vmatprep.subr.mxu0 0.0
    %1187 = vmatpush1.msra.mxu0 %v552
    %1188 = vmatprep.subr.mxu0 0.0
    %1189 = vmatpush1.msra.mxu0 0.0
    %1190 = vmatprep.subr.mxu0 0.0
    %1191 = vmatpush1.msra.mxu0 0.0
    %1192 = vmatprep.subr.mxu0 0.0
    %1193 = vmatpush1.msra.mxu0 0.0
    %1194 = vmatprep.subr.mxu0 0.0
    %1195 = vmatpush1.msra.mxu0 0.0
    %1196 = vmatprep.subr.mxu0 0.0
    %1197 = vmatpush1.msra.mxu0 0.0
    %1198 = vmatprep.subr.mxu0 0.0
    %1199 = vmatpush1.msra.mxu0 0.0
    %1200 = vmatprep.subr.mxu0 0.0
    %1201 = vmatpush1.msra.mxu0 0.0
    %1202 = vmatprep.subr.mxu0 0.0
    %1203 = vmatpush1.msra.mxu0 0.0
    %1204 = vmatprep.subr.mxu0 0.0
    %1205 = vmatpush1.msra.mxu0 0.0
    %1206 = vmatprep.subr.mxu0 0.0
    %1207 = vmatpush1.msra.mxu0 0.0
    %1208 = vmatprep.subr.mxu0 0.0
    %1209 = vmatpush1.msra.mxu0 0.0
    %1210 = vmatprep.subr.mxu0 0.0
    %1211 = vmatpush1.msra.mxu0 0.0
    %1212 = vmatprep.subr.mxu0 0.0
    %1213 = vmatpush1.msra.mxu0 0.0
    %1214 = vmatprep.subr.mxu0 0.0
    %1215 = vmatpush1.msra.mxu0 0.0
    %1216 = vmatprep.subr.mxu0 0.0
    %1217 = vmatpush1.msra.mxu0 0.0
    %1218 = vmatprep.subr.mxu0 0.0
    %1219 = vmatpush1.msra.mxu0 0.0
    %1220 = vmatprep.subr.mxu0 0.0
    %1221 = vmatpush1.msra.mxu0 0.0
    %1222 = vmatprep.subr.mxu0 0.0
    %1223 = vmatpush1.msra.mxu0 0.0
    %1224 = vmatprep.subr.mxu0 0.0
    %1225 = vmatpush1.msra.mxu0 0.0
    %1226 = vmatprep.subr.mxu0 0.0
    %1227 = vmatpush1.msra.mxu0 0.0
    %1228 = vmatprep.subr.mxu0 0.0
    %1229 = vmatpush1.msra.mxu0 0.0
    %1230 = vmatprep.subr.mxu0 0.0
    %1231 = vmatpush1.msra.mxu0 0.0
    %1232 = vmatprep.subr.mxu0 0.0
    %1233 = vmatpush1.msra.mxu0 0.0
    %1234 = vmatprep.subr.mxu0 0.0
    %1235 = vmatpush1.msra.mxu0 0.0
    %1236 = vmatprep.subr.mxu0 0.0
    %1237 = vmatpush1.msra.mxu0 0.0
    %1238 = vmatprep.subr.mxu0 0.0
    %1239 = vmatpush1.msra.mxu0 0.0
    %1240 = vmatprep.subr.mxu0 0.0
    %1241 = vmatpush1.msra.mxu0 0.0
    %1242 = vmatprep.subr.mxu0 0.0
    %1243 = vmatpush1.msra.mxu0 0.0
    %1244 = vmatprep.subr.mxu0 0.0
    %1245 = vmatpush1.msra.mxu0 0.0
    %1246 = vmatprep.subr.mxu0 0.0
    %1247 = vmatpush1.msra.mxu0 0.0
    %1248 = vmatprep.subr.mxu0 0.0
    %1249 = vmatpush1.msra.mxu0 0.0
    %1250 = vmatprep.mubr.f32.mxu0 0.0
    %1251 = vmatmul.mubr.f32.gmra.mrb[0].mxu0 %v1184
    %v1252 = vpop.f32.mrb[0].mxu0
    %v1253 = vadd.f32 0.0, %v1252
    %v1254 = vpop.f32.mrb[0].mxu0
    %1255 = vdwg.mxu0
    %1257 = vrot.lane.b32.xlu0 %v1101, 32
    %v1258 = vpop.permute.xlu0 %1257
    %v1260 = vmul.f32 %v499, %v1258
    %1262 = vrot.lane.b32.xlu0 %v1253, 32
    %v1263 = vpop.permute.xlu0 %1262
    %v1265 = vmul.f32 %v1260, %v1263
    %1267 = vrot.lane.b32.xlu0 %v1265, 96
    %v1268 = vpop.permute.xlu0 %1267
    %v1269 = vsel %vm233, %v1268, 0
    %1271 = vmatprep.subr.mxu0 0.0
    %1272 = vmatpush1.xpose.msra.mxu0 %v1108
    %1273 = vmatprep.subr.mxu0 0.0
    %1274 = vmatpush1.xpose.msra.mxu0 0.0
    %1275 = vmatprep.subr.mxu0 0.0
    %1276 = vmatpush1.xpose.msra.mxu0 0.0
    %1277 = vmatprep.subr.mxu0 0.0
    %1278 = vmatpush1.xpose.msra.mxu0 0.0
    %1279 = vmatprep.subr.mxu0 0.0
    %1280 = vmatpush1.xpose.msra.mxu0 0.0
    %1281 = vmatprep.subr.mxu0 0.0
    %1282 = vmatpush1.xpose.msra.mxu0 0.0
    %1283 = vmatprep.subr.mxu0 0.0
    %1284 = vmatpush1.xpose.msra.mxu0 0.0
    %1285 = vmatprep.subr.mxu0 0.0
    %1286 = vmatpush1.xpose.msra.mxu0 0.0
    %1287 = vmatprep.subr.mxu0 0.0
    %1288 = vmatpush1.xpose.msra.mxu0 0.0
    %1289 = vmatprep.subr.mxu0 0.0
    %1290 = vmatpush1.xpose.msra.mxu0 0.0
    %1291 = vmatprep.subr.mxu0 0.0
    %1292 = vmatpush1.xpose.msra.mxu0 0.0
    %1293 = vmatprep.subr.mxu0 0.0
    %1294 = vmatpush1.xpose.msra.mxu0 0.0
    %1295 = vmatprep.subr.mxu0 0.0
    %1296 = vmatpush1.xpose.msra.mxu0 0.0
    %1297 = vmatprep.subr.mxu0 0.0
    %1298 = vmatpush1.xpose.msra.mxu0 0.0
    %1299 = vmatprep.subr.mxu0 0.0
    %1300 = vmatpush1.xpose.msra.mxu0 0.0
    %1301 = vmatprep.subr.mxu0 0.0
    %1302 = vmatpush1.xpose.msra.mxu0 0.0
    %1303 = vmatprep.subr.mxu0 0.0
    %1304 = vmatpush1.xpose.msra.mxu0 0.0
    %1305 = vmatprep.subr.mxu0 0.0
    %1306 = vmatpush1.xpose.msra.mxu0 0.0
    %1307 = vmatprep.subr.mxu0 0.0
    %1308 = vmatpush1.xpose.msra.mxu0 0.0
    %1309 = vmatprep.subr.mxu0 0.0
    %1310 = vmatpush1.xpose.msra.mxu0 0.0
    %1311 = vmatprep.subr.mxu0 0.0
    %1312 = vmatpush1.xpose.msra.mxu0 0.0
    %1313 = vmatprep.subr.mxu0 0.0
    %1314 = vmatpush1.xpose.msra.mxu0 0.0
    %1315 = vmatprep.subr.mxu0 0.0
    %1316 = vmatpush1.xpose.msra.mxu0 0.0
    %1317 = vmatprep.subr.mxu0 0.0
    %1318 = vmatpush1.xpose.msra.mxu0 0.0
    %1319 = vmatprep.subr.mxu0 0.0
    %1320 = vmatpush1.xpose.msra.mxu0 0.0
    %1321 = vmatprep.subr.mxu0 0.0
    %1322 = vmatpush1.xpose.msra.mxu0 0.0
    %1323 = vmatprep.subr.mxu0 0.0
    %1324 = vmatpush1.xpose.msra.mxu0 0.0
    %1325 = vmatprep.subr.mxu0 0.0
    %1326 = vmatpush1.xpose.msra.mxu0 0.0
    %1327 = vmatprep.subr.mxu0 0.0
    %1328 = vmatpush1.xpose.msra.mxu0 0.0
    %1329 = vmatprep.subr.mxu0 0.0
    %1330 = vmatpush1.xpose.msra.mxu0 0.0
    %1331 = vmatprep.subr.mxu0 0.0
    %1332 = vmatpush1.xpose.msra.mxu0 0.0
    %1333 = vmatprep.subr.mxu0 0.0
    %1334 = vmatpush1.xpose.msra.mxu0 0.0
    %1335 = vmatprep.mubr.f32.mxu0 0.0
    %1336 = vmatmul.mubr.f32.gmra.mrb[0].mxu0 %v1269
    %v1337 = vpop.f32.mrb[0].mxu0
    %v1338 = vadd.f32 0.0, %v1337
    %v1339 = vpop.f32.mrb[0].mxu0
    %1340 = vdwg.mxu0
    %v1341 = vmul.f32 %v1338, 0.125
    %v1343 = vsel %vm547, %v1341, 0
    %1345 = vmatprep.subr.mxu0 0.0
    %1346 = vmatpush1.msra.mxu0 %v552
    %1347 = vmatprep.subr.mxu0 0.0
    %1348 = vmatpush1.msra.mxu0 0.0
    %1349 = vmatprep.subr.mxu0 0.0
    %1350 = vmatpush1.msra.mxu0 0.0
    %1351 = vmatprep.subr.mxu0 0.0
    %1352 = vmatpush1.msra.mxu0 0.0
    %1353 = vmatprep.subr.mxu0 0.0
    %1354 = vmatpush1.msra.mxu0 0.0
    %1355 = vmatprep.subr.mxu0 0.0
    %1356 = vmatpush1.msra.mxu0 0.0
    %1357 = vmatprep.subr.mxu0 0.0
    %1358 = vmatpush1.msra.mxu0 0.0
    %1359 = vmatprep.subr.mxu0 0.0
    %1360 = vmatpush1.msra.mxu0 0.0
    %1361 = vmatprep.subr.mxu0 0.0
    %1362 = vmatpush1.msra.mxu0 0.0
    %1363 = vmatprep.subr.mxu0 0.0
    %1364 = vmatpush1.msra.mxu0 0.0
    %1365 = vmatprep.subr.mxu0 0.0
    %1366 = vmatpush1.msra.mxu0 0.0
    %1367 = vmatprep.subr.mxu0 0.0
    %1368 = vmatpush1.msra.mxu0 0.0
    %1369 = vmatprep.subr.mxu0 0.0
    %1370 = vmatpush1.msra.mxu0 0.0
    %1371 = vmatprep.subr.mxu0 0.0
    %1372 = vmatpush1.msra.mxu0 0.0
    %1373 = vmatprep.subr.mxu0 0.0
    %1374 = vmatpush1.msra.mxu0 0.0
    %1375 = vmatprep.subr.mxu0 0.0
    %1376 = vmatpush1.msra.mxu0 0.0
    %1377 = vmatprep.subr.mxu0 0.0
    %1378 = vmatpush1.msra.mxu0 0.0
    %1379 = vmatprep.subr.mxu0 0.0
    %1380 = vmatpush1.msra.mxu0 0.0
    %1381 = vmatprep.subr.mxu0 0.0
    %1382 = vmatpush1.msra.mxu0 0.0
    %1383 = vmatprep.subr.mxu0 0.0
    %1384 = vmatpush1.msra.mxu0 0.0
    %1385 = vmatprep.subr.mxu0 0.0
    %1386 = vmatpush1.msra.mxu0 0.0
    %1387 = vmatprep.subr.mxu0 0.0
    %1388 = vmatpush1.msra.mxu0 0.0
    %1389 = vmatprep.subr.mxu0 0.0
    %1390 = vmatpush1.msra.mxu0 0.0
    %1391 = vmatprep.subr.mxu0 0.0
    %1392 = vmatpush1.msra.mxu0 0.0
    %1393 = vmatprep.subr.mxu0 0.0
    %1394 = vmatpush1.msra.mxu0 0.0
    %1395 = vmatprep.subr.mxu0 0.0
    %1396 = vmatpush1.msra.mxu0 0.0
    %1397 = vmatprep.subr.mxu0 0.0
    %1398 = vmatpush1.msra.mxu0 0.0
    %1399 = vmatprep.subr.mxu0 0.0
    %1400 = vmatpush1.msra.mxu0 0.0
    %1401 = vmatprep.subr.mxu0 0.0
    %1402 = vmatpush1.msra.mxu0 0.0
    %1403 = vmatprep.subr.mxu0 0.0
    %1404 = vmatpush1.msra.mxu0 0.0
    %1405 = vmatprep.subr.mxu0 0.0
    %1406 = vmatpush1.msra.mxu0 0.0
    %1407 = vmatprep.subr.mxu0 0.0
    %1408 = vmatpush1.msra.mxu0 0.0
    %1409 = vmatprep.mubr.f32.mxu0 0.0
    %1410 = vmatmul.mubr.f32.gmra.mrb[0].mxu0 %v1343
    %v1411 = vpop.f32.mrb[0].mxu0
    %v1412 = vadd.f32 0.0, %v1411
    %v1413 = vpop.f32.mrb[0].mxu0
    %1414 = vdwg.mxu0
    %1416 = vrot.lane.b32.xlu0 %v1412, 32
    %v1417 = vpop.permute.xlu0 %1416
    %v1419 = vsub.f32 %v1265, %v1417
    %v1420 = vmul.f32 %v1419, %v1419
    %1422 = vrot.lane.b32.xlu0 %v1420, 96
    %v1423 = vpop.permute.xlu0 %1422
    %v1424 = vsel %vm233, %v1423, 0
    %1426 = vmatprep.subr.mxu0 0.0
    %1427 = vmatpush1.xpose.msra.mxu0 %v1108
    %1428 = vmatprep.subr.mxu0 0.0
    %1429 = vmatpush1.xpose.msra.mxu0 0.0
    %1430 = vmatprep.subr.mxu0 0.0
    %1431 = vmatpush1.xpose.msra.mxu0 0.0
    %1432 = vmatprep.subr.mxu0 0.0
    %1433 = vmatpush1.xpose.msra.mxu0 0.0
    %1434 = vmatprep.subr.mxu0 0.0
    %1435 = vmatpush1.xpose.msra.mxu0 0.0
    %1436 = vmatprep.subr.mxu0 0.0
    %1437 = vmatpush1.xpose.msra.mxu0 0.0
    %1438 = vmatprep.subr.mxu0 0.0
    %1439 = vmatpush1.xpose.msra.mxu0 0.0
    %1440 = vmatprep.subr.mxu0 0.0
    %1441 = vmatpush1.xpose.msra.mxu0 0.0
    %1442 = vmatprep.subr.mxu0 0.0
    %1443 = vmatpush1.xpose.msra.mxu0 0.0
    %1444 = vmatprep.subr.mxu0 0.0
    %1445 = vmatpush1.xpose.msra.mxu0 0.0
    %1446 = vmatprep.subr.mxu0 0.0
    %1447 = vmatpush1.xpose.msra.mxu0 0.0
    %1448 = vmatprep.subr.mxu0 0.0
    %1449 = vmatpush1.xpose.msra.mxu0 0.0
    %1450 = vmatprep.subr.mxu0 0.0
    %1451 = vmatpush1.xpose.msra.mxu0 0.0
    %1452 = vmatprep.subr.mxu0 0.0
    %1453 = vmatpush1.xpose.msra.mxu0 0.0
    %1454 = vmatprep.subr.mxu0 0.0
    %1455 = vmatpush1.xpose.msra.mxu0 0.0
    %1456 = vmatprep.subr.mxu0 0.0
    %1457 = vmatpush1.xpose.msra.mxu0 0.0
    %1458 = vmatprep.subr.mxu0 0.0
    %1459 = vmatpush1.xpose.msra.mxu0 0.0
    %1460 = vmatprep.subr.mxu0 0.0
    %1461 = vmatpush1.xpose.msra.mxu0 0.0
    %1462 = vmatprep.subr.mxu0 0.0
    %1463 = vmatpush1.xpose.msra.mxu0 0.0
    %1464 = vmatprep.subr.mxu0 0.0
    %1465 = vmatpush1.xpose.msra.mxu0 0.0
    %1466 = vmatprep.subr.mxu0 0.0
    %1467 = vmatpush1.xpose.msra.mxu0 0.0
    %1468 = vmatprep.subr.mxu0 0.0
    %1469 = vmatpush1.xpose.msra.mxu0 0.0
    %1470 = vmatprep.subr.mxu0 0.0
    %1471 = vmatpush1.xpose.msra.mxu0 0.0
    %1472 = vmatprep.subr.mxu0 0.0
    %1473 = vmatpush1.xpose.msra.mxu0 0.0
    %1474 = vmatprep.subr.mxu0 0.0
    %1475 = vmatpush1.xpose.msra.mxu0 0.0
    %1476 = vmatprep.subr.mxu0 0.0
    %1477 = vmatpush1.xpose.msra.mxu0 0.0
    %1478 = vmatprep.subr.mxu0 0.0
    %1479 = vmatpush1.xpose.msra.mxu0 0.0
    %1480 = vmatprep.subr.mxu0 0.0
    %1481 = vmatpush1.xpose.msra.mxu0 0.0
    %1482 = vmatprep.subr.mxu0 0.0
    %1483 = vmatpush1.xpose.msra.mxu0 0.0
    %1484 = vmatprep.subr.mxu0 0.0
    %1485 = vmatpush1.xpose.msra.mxu0 0.0
    %1486 = vmatprep.subr.mxu0 0.0
    %1487 = vmatpush1.xpose.msra.mxu0 0.0
    %1488 = vmatprep.subr.mxu0 0.0
    %1489 = vmatpush1.xpose.msra.mxu0 0.0
    %1490 = vmatprep.mubr.f32.mxu0 0.0
    %1491 = vmatmul.mubr.f32.gmra.mrb[0].mxu0 %v1424
    %v1492 = vpop.f32.mrb[0].mxu0
    %v1493 = vadd.f32 0.0, %v1492
    %v1494 = vpop.f32.mrb[0].mxu0
    %1495 = vdwg.mxu0
    %v1496 = vmul.f32 %v1493, 0.125
    %v1497 = vadd.f32 %v1496, 1e-05
    %v1498 = vrsqrt.pop %v1497
    %v1500 = vsel %vm547, %v1498, 0
    %1502 = vmatprep.subr.mxu0 0.0
    %1503 = vmatpush1.msra.mxu0 %v552
    %1504 = vmatprep.subr.mxu0 0.0
    %1505 = vmatpush1.msra.mxu0 0.0
    %1506 = vmatprep.subr.mxu0 0.0
    %1507 = vmatpush1.msra.mxu0 0.0
    %1508 = vmatprep.subr.mxu0 0.0
    %1509 = vmatpush1.msra.mxu0 0.0
    %1510 = vmatprep.subr.mxu0 0.0
    %1511 = vmatpush1.msra.mxu0 0.0
    %1512 = vmatprep.subr.mxu0 0.0
    %1513 = vmatpush1.msra.mxu0 0.0
    %1514 = vmatprep.subr.mxu0 0.0
    %1515 = vmatpush1.msra.mxu0 0.0
    %1516 = vmatprep.subr.mxu0 0.0
    %1517 = vmatpush1.msra.mxu0 0.0
    %1518 = vmatprep.subr.mxu0 0.0
    %1519 = vmatpush1.msra.mxu0 0.0
    %1520 = vmatprep.subr.mxu0 0.0
    %1521 = vmatpush1.msra.mxu0 0.0
    %1522 = vmatprep.subr.mxu0 0.0
    %1523 = vmatpush1.msra.mxu0 0.0
    %1524 = vmatprep.subr.mxu0 0.0
    %1525 = vmatpush1.msra.mxu0 0.0
    %1526 = vmatprep.subr.mxu0 0.0
    %1527 = vmatpush1.msra.mxu0 0.0
    %1528 = vmatprep.subr.mxu0 0.0
    %1529 = vmatpush1.msra.mxu0 0.0
    %1530 = vmatprep.subr.mxu0 0.0
    %1531 = vmatpush1.msra.mxu0 0.0
    %1532 = vmatprep.subr.mxu0 0.0
    %1533 = vmatpush1.msra.mxu0 0.0
    %1534 = vmatprep.subr.mxu0 0.0
    %1535 = vmatpush1.msra.mxu0 0.0
    %1536 = vmatprep.subr.mxu0 0.0
    %1537 = vmatpush1.msra.mxu0 0.0
    %1538 = vmatprep.subr.mxu0 0.0
    %1539 = vmatpush1.msra.mxu0 0.0
    %1540 = vmatprep.subr.mxu0 0.0
    %1541 = vmatpush1.msra.mxu0 0.0
    %1542 = vmatprep.subr.mxu0 0.0
    %1543 = vmatpush1.msra.mxu0 0.0
    %1544 = vmatprep.subr.mxu0 0.0
    %1545 = vmatpush1.msra.mxu0 0.0
    %1546 = vmatprep.subr.mxu0 0.0
    %1547 = vmatpush1.msra.mxu0 0.0
    %1548 = vmatprep.subr.mxu0 0.0
    %1549 = vmatpush1.msra.mxu0 0.0
    %1550 = vmatprep.subr.mxu0 0.0
    %1551 = vmatpush1.msra.mxu0 0.0
    %1552 = vmatprep.subr.mxu0 0.0
    %1553 = vmatpush1.msra.mxu0 0.0
    %1554 = vmatprep.subr.mxu0 0.0
    %1555 = vmatpush1.msra.mxu0 0.0
    %1556 = vmatprep.subr.mxu0 0.0
    %1557 = vmatpush1.msra.mxu0 0.0
    %1558 = vmatprep.subr.mxu0 0.0
    %1559 = vmatpush1.msra.mxu0 0.0
    %1560 = vmatprep.subr.mxu0 0.0
    %1561 = vmatpush1.msra.mxu0 0.0
    %1562 = vmatprep.subr.mxu0 0.0
    %1563 = vmatpush1.msra.mxu0 0.0
    %1564 = vmatprep.subr.mxu0 0.0
    %1565 = vmatpush1.msra.mxu0 0.0
    %1566 = vmatprep.mubr.f32.mxu0 0.0
    %1567 = vmatmul.mubr.f32.gmra.mrb[0].mxu0 %v1500
    %v1568 = vpop.f32.mrb[0].mxu0
    %v1569 = vadd.f32 0.0, %v1568
    %v1570 = vpop.f32.mrb[0].mxu0
    %1571 = vdwg.mxu0
    %1573 = vrot.lane.b32.xlu0 %v1569, 32
    %v1574 = vpop.permute.xlu0 %1573
    %v1576 = vmul.f32 %v1419, %v1574
    %v1577 = vld [vmem:[%s12] sm:$0x1]
    %v1578 = vlaneseq
    %v1579 = vshrl.u32 %v1578, 7
    %v1580 = vsub.s32 0, %v1579
    %v1581 = vrot.slane %v1577, %v1580
    %1583 = vrot.lane.b32.xlu0 %v1581, 32
    %v1584 = vpop.permute.xlu0 %1583
    %v1586 = vmul.f32 %v1576, %v1584
    %v1587 = vld [vmem:[%s12 + $0x1] sm:$0x1]
    %v1588 = vlaneseq
    %v1589 = vshrl.u32 %v1588, 7
    %v1590 = vsub.s32 0, %v1589
    %v1591 = vrot.slane %v1587, %v1590
    %1593 = vrot.lane.b32.xlu0 %v1591, 32
    %v1594 = vpop.permute.xlu0 %1593
    %v1596 = vadd.f32 %v1586, %v1594
    %1597 = vrot.lane.b32.xlu0 %v403, 88
    %v1598 = vpop.permute.xlu0 %1597
    %v1600 = vadd.f32 %v1596, %v1598
    %v1601 = vxor.u32 %v306, 2147483648
    %v1602 = vmul.f32 %v1601, 1.442695
    %v1603 = vpow.pop %v1602
    %v1604 = vadd.f32 %v1603, 1.0
    %v1605 = vrcp.pop %v1604
    %v1606 = vmul.f32 1.0, %v1605
    %v1607 = vmul.f32 %v306, %v1606
    %1609 = vrot.lane.b32.xlu0 %v1607, 32
    %v1610 = vpop.permute.xlu0 %1609
    %v1612 = vmul.f32 %v1600, %v1610
    %v1613 = vld [vmem:[%s10] sm:$0xff]
    %v1614 = vld [vmem:[%s10 + $0x8] sm:$0xff]
    %v1615 = vld [vmem:[%s10 + $0x10] sm:$0xff]
    %v1616 = vld [vmem:[%s10 + $0x18] sm:$0xff]
    %v1617 = vld [vmem:[%s11] sm:$0x1]
    %v1619 = vlaneseq
    %v1620 = vshrl.u32 %v1619, 7
    %v1621 = vsub.s32 0, %v1620
    %v1622 = vrot.slane %v1617, %v1621
    %1625 = vrot.lane.b32.xlu0 %v1612, 96
    %v1626 = vpop.permute.xlu0 %1625
    %v1627 = vsel %vm233, %v1626, 0
    %1629 = vmatprep.subr.mxu0 0.0
    %1630 = vmatpush1.msra.mxu0 %v1613
    %1631 = vmatprep.subr.mxu0 0.0
    %1632 = vmatpush1.msra.mxu0 %v1614
    %1633 = vmatprep.subr.mxu0 0.0
    %1634 = vmatpush1.msra.mxu0 %v1615
    %1635 = vmatprep.subr.mxu0 0.0
    %1636 = vmatpush1.msra.mxu0 %v1616
    %1637 = vmatprep.subr.mxu0 0.0
    %1638 = vmatpush1.msra.mxu0 0.0
    %1639 = vmatprep.subr.mxu0 0.0
    %1640 = vmatpush1.msra.mxu0 0.0
    %1641 = vmatprep.subr.mxu0 0.0
    %1642 = vmatpush1.msra.mxu0 0.0
    %1643 = vmatprep.subr.mxu0 0.0
    %1644 = vmatpush1.msra.mxu0 0.0
    %1645 = vmatprep.subr.mxu0 0.0
    %1646 = vmatpush1.msra.mxu0 0.0
    %1647 = vmatprep.subr.mxu0 0.0
    %1648 = vmatpush1.msra.mxu0 0.0
    %1649 = vmatprep.subr.mxu0 0.0
    %1650 = vmatpush1.msra.mxu0 0.0
    %1651 = vmatprep.subr.mxu0 0.0
    %1652 = vmatpush1.msra.mxu0 0.0
    %1653 = vmatprep.subr.mxu0 0.0
    %1654 = vmatpush1.msra.mxu0 0.0
    %1655 = vmatprep.subr.mxu0 0.0
    %1656 = vmatpush1.msra.mxu0 0.0
    %1657 = vmatprep.subr.mxu0 0.0
    %1658 = vmatpush1.msra.mxu0 0.0
    %1659 = vmatprep.subr.mxu0 0.0
    %1660 = vmatpush1.msra.mxu0 0.0
    %1661 = vmatprep.subr.mxu0 0.0
    %1662 = vmatpush1.msra.mxu0 0.0
    %1663 = vmatprep.subr.mxu0 0.0
    %1664 = vmatpush1.msra.mxu0 0.0
    %1665 = vmatprep.subr.mxu0 0.0
    %1666 = vmatpush1.msra.mxu0 0.0
    %1667 = vmatprep.subr.mxu0 0.0
    %1668 = vmatpush1.msra.mxu0 0.0
    %1669 = vmatprep.subr.mxu0 0.0
    %1670 = vmatpush1.msra.mxu0 0.0
    %1671 = vmatprep.subr.mxu0 0.0
    %1672 = vmatpush1.msra.mxu0 0.0
    %1673 = vmatprep.subr.mxu0 0.0
    %1674 = vmatpush1.msra.mxu0 0.0
    %1675 = vmatprep.subr.mxu0 0.0
    %1676 = vmatpush1.msra.mxu0 0.0
    %1677 = vmatprep.subr.mxu0 0.0
    %1678 = vmatpush1.msra.mxu0 0.0
    %1679 = vmatprep.subr.mxu0 0.0
    %1680 = vmatpush1.msra.mxu0 0.0
    %1681 = vmatprep.subr.mxu0 0.0
    %1682 = vmatpush1.msra.mxu0 0.0
    %1683 = vmatprep.subr.mxu0 0.0
    %1684 = vmatpush1.msra.mxu0 0.0
    %1685 = vmatprep.subr.mxu0 0.0
    %1686 = vmatpush1.msra.mxu0 0.0
    %1687 = vmatprep.subr.mxu0 0.0
    %1688 = vmatpush1.msra.mxu0 0.0
    %1689 = vmatprep.subr.mxu0 0.0
    %1690 = vmatpush1.msra.mxu0 0.0
    %1691 = vmatprep.subr.mxu0 0.0
    %1692 = vmatpush1.msra.mxu0 0.0
    %1693 = vmatprep.mubr.f32.mxu0 0.0
    %1694 = vmatmul.mubr.f32.gmra.mrb[0].mxu0 %v1627
    %v1695 = vpop.f32.mrb[0].mxu0
    %v1696 = vadd.f32 %v1622, %v1695
    %v1697 = vpop.f32.mrb[0].mxu0
    %1698 = vdwg.mxu0
    %v1699 = vadd.f32 %v1696, %v197
    %1700 = vst.msk [vmem:[#allocation20] sm:$0x3] %vm198, %v1699
    // Predicated region
    $region110: #{tpu_custom_call.1} parent=1 // pred_check
      _
    $region111: #{tpu_custom_call.1} parent=1 // pred_check_branch
      %1702 = sbr.rel (0) target = $region113
    $region112: #{tpu_custom_call.1} parent=1 // pred_region
      %s1704 = ssub.s32 32, 32
      %1705 = vsyncadd [#allocation4], %s1704
      %s1707 = sshll.u32 [#allocation20], 4
      %s1708 = int_to_ptr.vmem [resolvable:$true] %s1707
      %1710 = dma.vmem_to_hbm [thread:$0]  %s1708, 32, %s16, [#allocation4]
    $region113: #{tpu_custom_call.1} parent=1 // pred_fallthru
      _
    // Predicated region
    $region114: #{tpu_custom_call.1} parent=1 // pred_check
      _
    $region115: #{tpu_custom_call.1} parent=1 // pred_check_branch
      %1712 = sbr.rel (0) target = $region117
    $region116: #{tpu_custom_call.1} parent=1 // pred_region
      %s1714 = ssub.s32 64, 64
      %1715 = vsyncadd [#allocation22], %s1714
      %s1717 = sshll.u32 [#allocation21], 4
      %s1718 = int_to_ptr.vmem [resolvable:$true] %s1717
      %1720 = dma.vmem_to_hbm [thread:$0]  %s1718, 64, %s17, [#allocation22]
    $region117: #{tpu_custom_call.1} parent=1 // pred_fallthru
      _
    // Predicated region
    $region118: #{tpu_custom_call.1} parent=1 // pred_check
      _
    $region119: #{tpu_custom_call.1} parent=1 // pred_check_branch
      %1722 = sbr.rel (0) target = $region121
    $region120: #{tpu_custom_call.1} parent=1 // pred_region
      %s1724 = ssub.s32 32, 32
      %1725 = vsyncadd [#allocation22], %s1724
      %s1727 = sshll.u32 [#allocation23], 4
      %s1728 = int_to_ptr.vmem [resolvable:$true] %s1727
      %1730 = dma.vmem_to_hbm [thread:$0]  %s1728, 32, %s18, [#allocation22]
    $region121: #{tpu_custom_call.1} parent=1 // pred_fallthru
      _
    // Predicated region
    $region122: #{tpu_custom_call.1} parent=1 // pred_check
      _
    $region123: #{tpu_custom_call.1} parent=1 // pred_check_branch
      %1732 = sbr.rel (0) target = $region125
    $region124: #{tpu_custom_call.1} parent=1 // pred_region
      %s1734 = ssub.s32 32, 32
      %1735 = vsyncadd [#allocation25], %s1734
      %s1737 = sshll.u32 [#allocation24], 4
      %s1738 = int_to_ptr.vmem [resolvable:$true] %s1737
      %1740 = dma.vmem_to_hbm [thread:$0]  %s1738, 32, %s19, [#allocation25]
    $region125: #{tpu_custom_call.1} parent=1 // pred_fallthru
      _
    // Predicated region
    $region126: #{tpu_custom_call.1} parent=1 // pred_check
      _
    $region127: #{tpu_custom_call.1} parent=1 // pred_check_branch
      %1742 = sbr.rel (0) target = $region129
    $region128: #{tpu_custom_call.1} parent=1 // pred_region
      %1743 = dma.done [#allocation4], 32
    $region129: #{tpu_custom_call.1} parent=1 // pred_fallthru
      _
    // Predicated region
    $region130: #{tpu_custom_call.1} parent=1 // pred_check
      _
    $region131: #{tpu_custom_call.1} parent=1 // pred_check_branch
      %1745 = sbr.rel (0) target = $region133
    $region132: #{tpu_custom_call.1} parent=1 // pred_region
      %1746 = dma.done [#allocation22], 64
    $region133: #{tpu_custom_call.1} parent=1 // pred_fallthru
      _
    // Predicated region
    $region134: #{tpu_custom_call.1} parent=1 // pred_check
      _
    $region135: #{tpu_custom_call.1} parent=1 // pred_check_branch
      %1748 = sbr.rel (0) target = $region137
    $region136: #{tpu_custom_call.1} parent=1 // pred_region
      %1749 = dma.done [#allocation22], 32
    $region137: #{tpu_custom_call.1} parent=1 // pred_fallthru
      _
    // Predicated region
    $region138: #{tpu_custom_call.1} parent=1 // pred_check
      _
    $region139: #{tpu_custom_call.1} parent=1 // pred_check_branch
      %1751 = sbr.rel (0) target = $region141
    $region140: #{tpu_custom_call.1} parent=1 // pred_region
      %1752 = dma.done [#allocation25], 32
    $region141: #{tpu_custom_call.1} parent=1 // pred_fallthru
      _
    %1753 = vsyncpa [#allocation3], 1
    %1754 = vsyncpa [#allocation6], 1
    %1755 = vsyncpa [#allocation9], 1
    %1756 = vsyncpa [#allocation12], 1
    %1757 = vsyncpa [#allocation15], 1
    %1758 = vsyncpa [#allocation18], 1
    %1759 = vsyncpa [#allocation4], 1
    %1760 = vsyncpa [#allocation22], 1
    %1761 = vsyncpa [#allocation25], 1

</llo_original>
